<compile_context>
chip_gen: v7x
topology: tpu7x:2x2x1
jax: 0.10.0
libtpu: 0.0.40
codegen_flags: <defaults>
</compile_context>

<pallas_src>
import jax
import jax.numpy as jnp
from jax.experimental import pallas as pl
from jax.experimental.pallas import tpu as pltpu

LANE = 128


def _pad_lanes(v, width):
    """Pad the last (lane) dim of a value with zeros up to `width`."""
    pad = width - v.shape[-1]
    if pad == 0:
        return v
    return jnp.concatenate(
        [v, jnp.zeros(v.shape[:-1] + (pad,), v.dtype)], axis=-1)


def lstm_actor_kernel(
    x_ref,       # (B*T, S)  batch-major flattened inputs (row = b*T + t)
    h0_ref,      # (B, H)
    c0_ref,      # (B, H)
    wih_ref,     # (S, 4H) = W_ih^T, gate order i,f,g,o; i/f/o columns pre-scaled by 0.5
    whh_ref,     # (H, 4H) = W_hh^T, same pre-scaling
    b_ref,       # (1, 4H) = b_ih + b_hh, same pre-scaling
    w1_ref,      # (H, H)  fc[0].weight^T with BatchNorm folded in
    b1_ref,      # (1, H)
    w2_ref,      # (H, P)  fc[4].weight^T with BatchNorm folded in, lane padded
    b2_ref,      # (1, P)
    action_ref,  # (B, P)  out (lane-dense; wrapper slices to out_dim)
    hn_ref,      # (B, HP) out (lane-dense; wrapper slices to H)
    cn_ref,      # (B, HP) out
    gates_scr,   # (B*T, 4H) f32 VMEM scratch for the hoisted projection
):
    B, H = h0_ref.shape
    T = x_ref.shape[0] // B

    # Hoisted input projection: a single batched MXU matmul + fused bias, off
    # the serial recurrence chain.  Stored to VMEM scratch so per-step slabs
    # can be read back with a cheap strided sublane load (keeps vreg pressure
    # low and avoids any wrapper-side transpose).
    gates_scr[...] = (
        jnp.dot(x_ref[...], wih_ref[...], preferred_element_type=jnp.float32)
        + b_ref[...]
    )

    whh = whh_ref[...]
    h = h0_ref[...]   # carried in vregs across the unrolled loop
    c = c0_ref[...]

    # T is small and fixed -> fully unrolled so the VLIW scheduler can
    # interleave MXU / EUP / VPU work across adjacent timesteps.
    for t in range(T):
        # Rows b*T + t for b = 0..B-1  ->  (B, 4H) slab for timestep t.
        gx = gates_scr[pl.ds(t, B, stride=T), :]
        gates = gx + jnp.dot(h, whh, preferred_element_type=jnp.float32)

        # Single EUP pass per step: tanh over the full (B, 4H) vreg.  The
        # i/f/o columns were pre-scaled by 0.5, so sigmoid(z) = 0.5*tanh(z/2)+0.5
        # is one VPU fma on the tanh result; the g column is a true tanh gate.
        tg = jnp.tanh(gates)
        sg = 0.5 * tg + 0.5          # valid for the i/f/o columns only
        i_g = sg[:, 0 * H:1 * H]
        f_g = sg[:, 1 * H:2 * H]
        g_g = tg[:, 2 * H:3 * H]
        o_g = sg[:, 3 * H:4 * H]

        c = f_g * c + i_g * g_g
        h = o_g * jnp.tanh(c)

    # Lane-dense final stores (unmasked vst); wrapper slices back to H.
    hn_ref[...] = _pad_lanes(h, hn_ref.shape[1])
    cn_ref[...] = _pad_lanes(c, cn_ref.shape[1])

    # fc head; eval-mode BatchNorm already folded into w1/b1 and w2/b2.
    # TODO(synk): nn.Dropout is identity in eval mode; training-mode RNG dropout not implemented.
    y = jnp.dot(h, w1_ref[...], preferred_element_type=jnp.float32) + b1_ref[...]
    y = jnp.maximum(y, 0.0)                                          # ReLU
    y = jnp.dot(y, w2_ref[...], preferred_element_type=jnp.float32) + b2_ref[...]
    action_ref[...] = jnp.tanh(y)


def prepare_params(params, out_dim):
    """One-time parameter prep: transposes, bias fusion, BN folding, gate
    pre-scaling for the sigmoid-via-tanh trick, and lane padding."""
    H = params["w_hh"].shape[1]

    # sigmoid(z) = 0.5*tanh(z/2) + 0.5 : pre-scale the i/f/o gate columns by
    # 0.5 so the kernel needs a single tanh over the (B, 4H) gate slab per step.
    gate_scale = jnp.concatenate([
        jnp.full((H,), 0.5),   # i
        jnp.full((H,), 0.5),   # f
        jnp.ones((H,)),        # g (true tanh gate)
        jnp.full((H,), 0.5),   # o
    ]).astype(jnp.float32)

    w_ih_t = params["w_ih"].T * gate_scale[None, :]                  # (S, 4H)
    w_hh_t = params["w_hh"].T * gate_scale[None, :]                  # (H, 4H)
    b_gates = ((params["b_ih"] + params["b_hh"]) * gate_scale).reshape(1, 4 * H)

    # Eval-mode BatchNorm as affine: bn(z) = z * a + d.  The module applies the
    # SAME BatchNorm1d instance before the fc head and inside it, so identical
    # stats fold into both Linear layers.
    a = params["bn_gamma"] / jnp.sqrt(params["bn_var"] + 1e-5)       # (H,)
    d = params["bn_beta"] - params["bn_mean"] * a                    # (H,)

    w1t = params["w1"].T                                             # (H, H)
    w2t = params["w2"].T                                             # (H, O)
    # bn(h) @ W1^T + b1 == h @ (a[:,None]*W1^T) + (d @ W1^T + b1)
    w1f = a[:, None] * w1t
    b1f = (params["b1"] + d @ w1t).reshape(1, H)
    # bn(relu(y)) @ W2^T + b2 == relu(y) @ (a[:,None]*W2^T) + (d @ W2^T + b2)
    w2f = a[:, None] * w2t
    b2f = (params["b2"] + d @ w2t).reshape(1, out_dim)

    # Pad the action path to a full 128-lane width -> unmasked final store.
    P = ((out_dim + LANE - 1) // LANE) * LANE
    pad = P - out_dim
    w2f = jnp.pad(w2f, ((0, 0), (0, pad)))
    b2f = jnp.pad(b2f, ((0, 0), (0, pad)))

    return {
        "w_ih_t": w_ih_t,
        "w_hh_t": w_hh_t,
        "b_gates": b_gates,
        "w1f": w1f, "b1f": b1f,
        "w2f": w2f, "b2f": b2f,
        "out_dim": out_dim,
    }


def lstm_actor_forward(state, hidden, prepped):
    """state: (B, T, S) f32; hidden = (h0, c0) each (1, B, H) f32."""
    h0, c0 = hidden
    B, T, S = state.shape
    H = h0.shape[-1]
    out_dim = prepped["out_dim"]
    P = prepped["w2f"].shape[1]
    HP = ((H + LANE - 1) // LANE) * LANE   # lane-padded h/c output width

    # Batch-major flatten (row = b*T + t): a free contiguous reshape -- no XLA
    # transpose dispatch.  The kernel extracts per-step slabs with a strided read.
    x_flat = state.reshape(B * T, S)

    vmem = pl.BlockSpec(memory_space=pltpu.MemorySpace.VMEM)
    args = (
        x_flat, h0[0], c0[0],
        prepped["w_ih_t"], prepped["w_hh_t"], prepped["b_gates"],
        prepped["w1f"], prepped["b1f"], prepped["w2f"], prepped["b2f"],
    )

    action_p, hn_p, cn_p = pl.pallas_call(
        lstm_actor_kernel,
        out_shape=(
            jax.ShapeDtypeStruct((B, P), jnp.float32),
            jax.ShapeDtypeStruct((B, HP), jnp.float32),
            jax.ShapeDtypeStruct((B, HP), jnp.float32),
        ),
        in_specs=[vmem] * len(args),
        out_specs=(vmem, vmem, vmem),
        scratch_shapes=[pltpu.VMEM((B * T, 4 * H), jnp.float32)],
    )(*args)

    action = action_p[:, :out_dim]
    h_n = hn_p[:, :H]
    c_n = cn_p[:, :H]
    # PyTorch: action = fc(output).unsqueeze(1); (h_n, c_n) keep the (1, B, H) layer axis.
    return action[:, None, :], (h_n[None], c_n[None])


def reference_forward(state, hidden, params):
    """Pure-JAX reference mirroring the PyTorch eval-mode forward."""
    h0, c0 = hidden
    h, c = h0[0], c0[0]
    H = h.shape[-1]
    b = params["b_ih"] + params["b_hh"]
    for t in range(state.shape[1]):
        gates = state[:, t, :] @ params["w_ih"].T + h @ params["w_hh"].T + b
        i = jax.nn.sigmoid(gates[:, :H])
        f = jax.nn.sigmoid(gates[:, H:2 * H])
        g = jnp.tanh(gates[:, 2 * H:3 * H])
        o = jax.nn.sigmoid(gates[:, 3 * H:])
        c = f * c + i * g
        h = o * jnp.tanh(c)

    def bn(z):
        return ((z - params["bn_mean"]) / jnp.sqrt(params["bn_var"] + 1e-5)
                * params["bn_gamma"] + params["bn_beta"])

    y = bn(h)                                                   # batch_norm(output[:, -1, :])
    y = jnp.maximum(y @ params["w1"].T + params["b1"], 0.0)     # Linear + ReLU
    y = bn(y)                                                   # same BatchNorm1d instance inside fc
    y = jnp.tanh(y @ params["w2"].T + params["b2"])             # Linear + Tanh
    return y[:, None, :], (h[None], c[None])


def init_params(key, state_size, hidden_size, out_dim):
    k = 1.0 / jnp.sqrt(hidden_size)
    keys = jax.random.split(key, 8)
    u = lambda kk, shp, bound: jax.random.uniform(kk, shp, jnp.float32, -bound, bound)
    return {
        "w_ih": u(keys[0], (4 * hidden_size, state_size), k),
        "w_hh": u(keys[1], (4 * hidden_size, hidden_size), k),
        "b_ih": u(keys[2], (4 * hidden_size,), k),
        "b_hh": u(keys[3], (4 * hidden_size,), k),
        # BatchNorm1d defaults (fresh module, eval mode) -- matches PyTorch init.
        "bn_gamma": jnp.ones((hidden_size,), jnp.float32),
        "bn_beta": jnp.zeros((hidden_size,), jnp.float32),
        "bn_mean": jnp.zeros((hidden_size,), jnp.float32),
        "bn_var": jnp.ones((hidden_size,), jnp.float32),
        "w1": u(keys[4], (hidden_size, hidden_size), k),
        "b1": u(keys[5], (hidden_size,), k),
        "w2": u(keys[6], (out_dim, hidden_size), k),
        "b2": u(keys[7], (out_dim,), k),
    }


if __name__ == "__main__":
    B, T, S, H, OUT = 8, 8, 16, 32, 4

    root = jax.random.PRNGKey(0)
    k_state, k_h, k_c, k_params = jax.random.split(root, 4)

    state = jax.random.normal(k_state, (B, T, S), jnp.float32)
    h0 = jax.random.normal(k_h, (1, B, H), jnp.float32)
    c0 = jax.random.normal(k_c, (1, B, H), jnp.float32)
    params = init_params(k_params, S, H, OUT)

    prepped = prepare_params(params, OUT)          # one-time weight prep

    fwd = jax.jit(lambda s, hid: lstm_actor_forward(s, hid, prepped))
    action, (h_n, c_n) = jax.block_until_ready(fwd(state, (h0, c0)))

    ref_action, (ref_h, ref_c) = reference_forward(state, (h0, c0), params)

    assert action.shape == (B, 1, OUT)
    assert h_n.shape == (1, B, H) and c_n.shape == (1, B, H)
    assert jnp.allclose(action, ref_action, rtol=1e-4, atol=1e-4)
    assert jnp.allclose(h_n, ref_h, rtol=1e-4, atol=1e-4)
    assert jnp.allclose(c_n, ref_c, rtol=1e-4, atol=1e-4)

    print("KERNEL_OK")
</pallas_src>

<mosaic_0001>
module attributes {stable_mosaic.version = 11 : i64} {
  func.func @lstm_actor_kernel(%arg0: memref<64x16xf32, #tpu.memory_space<vmem>>, %arg1: memref<8x32xf32, #tpu.memory_space<vmem>>, %arg2: memref<8x32xf32, #tpu.memory_space<vmem>>, %arg3: memref<16x128xf32, #tpu.memory_space<vmem>>, %arg4: memref<32x128xf32, #tpu.memory_space<vmem>>, %arg5: memref<1x128xf32, #tpu.memory_space<vmem>>, %arg6: memref<32x32xf32, #tpu.memory_space<vmem>>, %arg7: memref<1x32xf32, #tpu.memory_space<vmem>>, %arg8: memref<32x128xf32, #tpu.memory_space<vmem>>, %arg9: memref<1x128xf32, #tpu.memory_space<vmem>>, %arg10: memref<8x128xf32, #tpu.memory_space<vmem>>, %arg11: memref<8x128xf32, #tpu.memory_space<vmem>>, %arg12: memref<8x128xf32, #tpu.memory_space<vmem>>, %arg13: memref<64x128xf32, #tpu.memory_space<vmem>>) attributes {dimension_semantics = [], scalar_prefetch = 0 : i64, scratch_operands = 1 : i64, tpu.core_type = #tpu.core_type<tc>} {
    %c0 = arith.constant 0 : index
    %c0_0 = arith.constant 0 : index
    %0 = vector.load %arg0[%c0, %c0_0] : memref<64x16xf32, #tpu.memory_space<vmem>>, vector<64x16xf32>
    %c0_1 = arith.constant 0 : index
    %c0_2 = arith.constant 0 : index
    %1 = vector.load %arg3[%c0_1, %c0_2] : memref<16x128xf32, #tpu.memory_space<vmem>>, vector<16x128xf32>
    %cst = arith.constant dense<0.000000e+00> : vector<64x128xf32>
    %2 = tpu.matmul %0, %1, %cst {dimension_numbers = #tpu.dot_dimension_numbers<[1], [0], [0], [1], [0, 0, 1, 1], [], []>} : vector<64x16xf32>, vector<16x128xf32>, vector<64x128xf32> -> vector<64x128xf32>
    %c0_3 = arith.constant 0 : index
    %c0_4 = arith.constant 0 : index
    %3 = vector.load %arg5[%c0_3, %c0_4] : memref<1x128xf32, #tpu.memory_space<vmem>>, vector<1x128xf32>
    %4 = vector.broadcast %3 : vector<1x128xf32> to vector<64x128xf32>
    %5 = arith.addf %2, %4 : vector<64x128xf32>
    %c0_5 = arith.constant 0 : index
    %c0_6 = arith.constant 0 : index
    %6 = vector.load %arg13[%c0_5, %c0_6] : memref<64x128xf32, #tpu.memory_space<vmem>>, vector<64x128xf32>
    tpu.vector_store %arg13[%c0_5, %c0_6], %5 {strides = array<i32>} : memref<64x128xf32, #tpu.memory_space<vmem>>, vector<64x128xf32>,
    %c0_7 = arith.constant 0 : index
    %c0_8 = arith.constant 0 : index
    %7 = vector.load %arg4[%c0_7, %c0_8] : memref<32x128xf32, #tpu.memory_space<vmem>>, vector<32x128xf32>
    %c0_9 = arith.constant 0 : index
    %c0_10 = arith.constant 0 : index
    %8 = vector.load %arg1[%c0_9, %c0_10] : memref<8x32xf32, #tpu.memory_space<vmem>>, vector<8x32xf32>
    %c0_11 = arith.constant 0 : index
    %c0_12 = arith.constant 0 : index
    %9 = vector.load %arg2[%c0_11, %c0_12] : memref<8x32xf32, #tpu.memory_space<vmem>>, vector<8x32xf32>
    %c0_13 = arith.constant 0 : index
    %c0_14 = arith.constant 0 : index
    %10 = tpu.strided_load %arg13[%c0_13, %c0_14] {strides = array<i32: 8, 1>} : memref<64x128xf32, #tpu.memory_space<vmem>>, vector<8x128xf32>
    %cst_15 = arith.constant dense<0.000000e+00> : vector<8x128xf32>
    %11 = tpu.matmul %8, %7, %cst_15 {dimension_numbers = #tpu.dot_dimension_numbers<[1], [0], [0], [1], [0, 0, 1, 1], [], []>} : vector<8x32xf32>, vector<32x128xf32>, vector<8x128xf32> -> vector<8x128xf32>
    %12 = arith.addf %10, %11 : vector<8x128xf32>
    %13 = math.tanh %12 : vector<8x128xf32>
    %cst_16 = arith.constant 5.000000e-01 : f32
    %14 = vector.broadcast %cst_16 : f32 to vector<8x128xf32>
    %15 = arith.mulf %14, %13 : vector<8x128xf32>
    %cst_17 = arith.constant 5.000000e-01 : f32
    %16 = vector.broadcast %cst_17 : f32 to vector<8x128xf32>
    %17 = arith.addf %15, %16 : vector<8x128xf32>
    %18 = vector.extract_strided_slice %17 {offsets = [0, 0], sizes = [8, 32], strides = [1, 1]} : vector<8x128xf32> to vector<8x32xf32>
    %19 = vector.extract_strided_slice %17 {offsets = [0, 32], sizes = [8, 32], strides = [1, 1]} : vector<8x128xf32> to vector<8x32xf32>
    %20 = vector.extract_strided_slice %13 {offsets = [0, 64], sizes = [8, 32], strides = [1, 1]} : vector<8x128xf32> to vector<8x32xf32>
    %21 = vector.extract_strided_slice %17 {offsets = [0, 96], sizes = [8, 32], strides = [1, 1]} : vector<8x128xf32> to vector<8x32xf32>
    %22 = arith.mulf %19, %9 : vector<8x32xf32>
    %23 = arith.mulf %18, %20 : vector<8x32xf32>
    %24 = arith.addf %22, %23 : vector<8x32xf32>
    %25 = math.tanh %24 : vector<8x32xf32>
    %26 = arith.mulf %21, %25 : vector<8x32xf32>
    %c1 = arith.constant 1 : index
    %c0_18 = arith.constant 0 : index
    %27 = tpu.strided_load %arg13[%c1, %c0_18] {strides = array<i32: 8, 1>} : memref<64x128xf32, #tpu.memory_space<vmem>>, vector<8x128xf32>
    %cst_19 = arith.constant dense<0.000000e+00> : vector<8x128xf32>
    %28 = tpu.matmul %26, %7, %cst_19 {dimension_numbers = #tpu.dot_dimension_numbers<[1], [0], [0], [1], [0, 0, 1, 1], [], []>} : vector<8x32xf32>, vector<32x128xf32>, vector<8x128xf32> -> vector<8x128xf32>
    %29 = arith.addf %27, %28 : vector<8x128xf32>
    %30 = math.tanh %29 : vector<8x128xf32>
    %cst_20 = arith.constant 5.000000e-01 : f32
    %31 = vector.broadcast %cst_20 : f32 to vector<8x128xf32>
    %32 = arith.mulf %31, %30 : vector<8x128xf32>
    %cst_21 = arith.constant 5.000000e-01 : f32
    %33 = vector.broadcast %cst_21 : f32 to vector<8x128xf32>
    %34 = arith.addf %32, %33 : vector<8x128xf32>
    %35 = vector.extract_strided_slice %34 {offsets = [0, 0], sizes = [8, 32], strides = [1, 1]} : vector<8x128xf32> to vector<8x32xf32>
    %36 = vector.extract_strided_slice %34 {offsets = [0, 32], sizes = [8, 32], strides = [1, 1]} : vector<8x128xf32> to vector<8x32xf32>
    %37 = vector.extract_strided_slice %30 {offsets = [0, 64], sizes = [8, 32], strides = [1, 1]} : vector<8x128xf32> to vector<8x32xf32>
    %38 = vector.extract_strided_slice %34 {offsets = [0, 96], sizes = [8, 32], strides = [1, 1]} : vector<8x128xf32> to vector<8x32xf32>
    %39 = arith.mulf %36, %24 : vector<8x32xf32>
    %40 = arith.mulf %35, %37 : vector<8x32xf32>
    %41 = arith.addf %39, %40 : vector<8x32xf32>
    %42 = math.tanh %41 : vector<8x32xf32>
    %43 = arith.mulf %38, %42 : vector<8x32xf32>
    %c2 = arith.constant 2 : index
    %c0_22 = arith.constant 0 : index
    %44 = tpu.strided_load %arg13[%c2, %c0_22] {strides = array<i32: 8, 1>} : memref<64x128xf32, #tpu.memory_space<vmem>>, vector<8x128xf32>
    %cst_23 = arith.constant dense<0.000000e+00> : vector<8x128xf32>
    %45 = tpu.matmul %43, %7, %cst_23 {dimension_numbers = #tpu.dot_dimension_numbers<[1], [0], [0], [1], [0, 0, 1, 1], [], []>} : vector<8x32xf32>, vector<32x128xf32>, vector<8x128xf32> -> vector<8x128xf32>
    %46 = arith.addf %44, %45 : vector<8x128xf32>
    %47 = math.tanh %46 : vector<8x128xf32>
    %cst_24 = arith.constant 5.000000e-01 : f32
    %48 = vector.broadcast %cst_24 : f32 to vector<8x128xf32>
    %49 = arith.mulf %48, %47 : vector<8x128xf32>
    %cst_25 = arith.constant 5.000000e-01 : f32
    %50 = vector.broadcast %cst_25 : f32 to vector<8x128xf32>
    %51 = arith.addf %49, %50 : vector<8x128xf32>
    %52 = vector.extract_strided_slice %51 {offsets = [0, 0], sizes = [8, 32], strides = [1, 1]} : vector<8x128xf32> to vector<8x32xf32>
    %53 = vector.extract_strided_slice %51 {offsets = [0, 32], sizes = [8, 32], strides = [1, 1]} : vector<8x128xf32> to vector<8x32xf32>
    %54 = vector.extract_strided_slice %47 {offsets = [0, 64], sizes = [8, 32], strides = [1, 1]} : vector<8x128xf32> to vector<8x32xf32>
    %55 = vector.extract_strided_slice %51 {offsets = [0, 96], sizes = [8, 32], strides = [1, 1]} : vector<8x128xf32> to vector<8x32xf32>
    %56 = arith.mulf %53, %41 : vector<8x32xf32>
    %57 = arith.mulf %52, %54 : vector<8x32xf32>
    %58 = arith.addf %56, %57 : vector<8x32xf32>
    %59 = math.tanh %58 : vector<8x32xf32>
    %60 = arith.mulf %55, %59 : vector<8x32xf32>
    %c3 = arith.constant 3 : index
    %c0_26 = arith.constant 0 : index
    %61 = tpu.strided_load %arg13[%c3, %c0_26] {strides = array<i32: 8, 1>} : memref<64x128xf32, #tpu.memory_space<vmem>>, vector<8x128xf32>
    %cst_27 = arith.constant dense<0.000000e+00> : vector<8x128xf32>
    %62 = tpu.matmul %60, %7, %cst_27 {dimension_numbers = #tpu.dot_dimension_numbers<[1], [0], [0], [1], [0, 0, 1, 1], [], []>} : vector<8x32xf32>, vector<32x128xf32>, vector<8x128xf32> -> vector<8x128xf32>
    %63 = arith.addf %61, %62 : vector<8x128xf32>
    %64 = math.tanh %63 : vector<8x128xf32>
    %cst_28 = arith.constant 5.000000e-01 : f32
    %65 = vector.broadcast %cst_28 : f32 to vector<8x128xf32>
    %66 = arith.mulf %65, %64 : vector<8x128xf32>
    %cst_29 = arith.constant 5.000000e-01 : f32
    %67 = vector.broadcast %cst_29 : f32 to vector<8x128xf32>
    %68 = arith.addf %66, %67 : vector<8x128xf32>
    %69 = vector.extract_strided_slice %68 {offsets = [0, 0], sizes = [8, 32], strides = [1, 1]} : vector<8x128xf32> to vector<8x32xf32>
    %70 = vector.extract_strided_slice %68 {offsets = [0, 32], sizes = [8, 32], strides = [1, 1]} : vector<8x128xf32> to vector<8x32xf32>
    %71 = vector.extract_strided_slice %64 {offsets = [0, 64], sizes = [8, 32], strides = [1, 1]} : vector<8x128xf32> to vector<8x32xf32>
    %72 = vector.extract_strided_slice %68 {offsets = [0, 96], sizes = [8, 32], strides = [1, 1]} : vector<8x128xf32> to vector<8x32xf32>
    %73 = arith.mulf %70, %58 : vector<8x32xf32>
    %74 = arith.mulf %69, %71 : vector<8x32xf32>
    %75 = arith.addf %73, %74 : vector<8x32xf32>
    %76 = math.tanh %75 : vector<8x32xf32>
    %77 = arith.mulf %72, %76 : vector<8x32xf32>
    %c4 = arith.constant 4 : index
    %c0_30 = arith.constant 0 : index
    %78 = tpu.strided_load %arg13[%c4, %c0_30] {strides = array<i32: 8, 1>} : memref<64x128xf32, #tpu.memory_space<vmem>>, vector<8x128xf32>
    %cst_31 = arith.constant dense<0.000000e+00> : vector<8x128xf32>
    %79 = tpu.matmul %77, %7, %cst_31 {dimension_numbers = #tpu.dot_dimension_numbers<[1], [0], [0], [1], [0, 0, 1, 1], [], []>} : vector<8x32xf32>, vector<32x128xf32>, vector<8x128xf32> -> vector<8x128xf32>
    %80 = arith.addf %78, %79 : vector<8x128xf32>
    %81 = math.tanh %80 : vector<8x128xf32>
    %cst_32 = arith.constant 5.000000e-01 : f32
    %82 = vector.broadcast %cst_32 : f32 to vector<8x128xf32>
    %83 = arith.mulf %82, %81 : vector<8x128xf32>
    %cst_33 = arith.constant 5.000000e-01 : f32
    %84 = vector.broadcast %cst_33 : f32 to vector<8x128xf32>
    %85 = arith.addf %83, %84 : vector<8x128xf32>
    %86 = vector.extract_strided_slice %85 {offsets = [0, 0], sizes = [8, 32], strides = [1, 1]} : vector<8x128xf32> to vector<8x32xf32>
    %87 = vector.extract_strided_slice %85 {offsets = [0, 32], sizes = [8, 32], strides = [1, 1]} : vector<8x128xf32> to vector<8x32xf32>
    %88 = vector.extract_strided_slice %81 {offsets = [0, 64], sizes = [8, 32], strides = [1, 1]} : vector<8x128xf32> to vector<8x32xf32>
    %89 = vector.extract_strided_slice %85 {offsets = [0, 96], sizes = [8, 32], strides = [1, 1]} : vector<8x128xf32> to vector<8x32xf32>
    %90 = arith.mulf %87, %75 : vector<8x32xf32>
    %91 = arith.mulf %86, %88 : vector<8x32xf32>
    %92 = arith.addf %90, %91 : vector<8x32xf32>
    %93 = math.tanh %92 : vector<8x32xf32>
    %94 = arith.mulf %89, %93 : vector<8x32xf32>
    %c5 = arith.constant 5 : index
    %c0_34 = arith.constant 0 : index
    %95 = tpu.strided_load %arg13[%c5, %c0_34] {strides = array<i32: 8, 1>} : memref<64x128xf32, #tpu.memory_space<vmem>>, vector<8x128xf32>
    %cst_35 = arith.constant dense<0.000000e+00> : vector<8x128xf32>
    %96 = tpu.matmul %94, %7, %cst_35 {dimension_numbers = #tpu.dot_dimension_numbers<[1], [0], [0], [1], [0, 0, 1, 1], [], []>} : vector<8x32xf32>, vector<32x128xf32>, vector<8x128xf32> -> vector<8x128xf32>
    %97 = arith.addf %95, %96 : vector<8x128xf32>
    %98 = math.tanh %97 : vector<8x128xf32>
    %cst_36 = arith.constant 5.000000e-01 : f32
    %99 = vector.broadcast %cst_36 : f32 to vector<8x128xf32>
    %100 = arith.mulf %99, %98 : vector<8x128xf32>
    %cst_37 = arith.constant 5.000000e-01 : f32
    %101 = vector.broadcast %cst_37 : f32 to vector<8x128xf32>
    %102 = arith.addf %100, %101 : vector<8x128xf32>
    %103 = vector.extract_strided_slice %102 {offsets = [0, 0], sizes = [8, 32], strides = [1, 1]} : vector<8x128xf32> to vector<8x32xf32>
    %104 = vector.extract_strided_slice %102 {offsets = [0, 32], sizes = [8, 32], strides = [1, 1]} : vector<8x128xf32> to vector<8x32xf32>
    %105 = vector.extract_strided_slice %98 {offsets = [0, 64], sizes = [8, 32], strides = [1, 1]} : vector<8x128xf32> to vector<8x32xf32>
    %106 = vector.extract_strided_slice %102 {offsets = [0, 96], sizes = [8, 32], strides = [1, 1]} : vector<8x128xf32> to vector<8x32xf32>
    %107 = arith.mulf %104, %92 : vector<8x32xf32>
    %108 = arith.mulf %103, %105 : vector<8x32xf32>
    %109 = arith.addf %107, %108 : vector<8x32xf32>
    %110 = math.tanh %109 : vector<8x32xf32>
    %111 = arith.mulf %106, %110 : vector<8x32xf32>
    %c6 = arith.constant 6 : index
    %c0_38 = arith.constant 0 : index
    %112 = tpu.strided_load %arg13[%c6, %c0_38] {strides = array<i32: 8, 1>} : memref<64x128xf32, #tpu.memory_space<vmem>>, vector<8x128xf32>
    %cst_39 = arith.constant dense<0.000000e+00> : vector<8x128xf32>
    %113 = tpu.matmul %111, %7, %cst_39 {dimension_numbers = #tpu.dot_dimension_numbers<[1], [0], [0], [1], [0, 0, 1, 1], [], []>} : vector<8x32xf32>, vector<32x128xf32>, vector<8x128xf32> -> vector<8x128xf32>
    %114 = arith.addf %112, %113 : vector<8x128xf32>
    %115 = math.tanh %114 : vector<8x128xf32>
    %cst_40 = arith.constant 5.000000e-01 : f32
    %116 = vector.broadcast %cst_40 : f32 to vector<8x128xf32>
    %117 = arith.mulf %116, %115 : vector<8x128xf32>
    %cst_41 = arith.constant 5.000000e-01 : f32
    %118 = vector.broadcast %cst_41 : f32 to vector<8x128xf32>
    %119 = arith.addf %117, %118 : vector<8x128xf32>
    %120 = vector.extract_strided_slice %119 {offsets = [0, 0], sizes = [8, 32], strides = [1, 1]} : vector<8x128xf32> to vector<8x32xf32>
    %121 = vector.extract_strided_slice %119 {offsets = [0, 32], sizes = [8, 32], strides = [1, 1]} : vector<8x128xf32> to vector<8x32xf32>
    %122 = vector.extract_strided_slice %115 {offsets = [0, 64], sizes = [8, 32], strides = [1, 1]} : vector<8x128xf32> to vector<8x32xf32>
    %123 = vector.extract_strided_slice %119 {offsets = [0, 96], sizes = [8, 32], strides = [1, 1]} : vector<8x128xf32> to vector<8x32xf32>
    %124 = arith.mulf %121, %109 : vector<8x32xf32>
    %125 = arith.mulf %120, %122 : vector<8x32xf32>
    %126 = arith.addf %124, %125 : vector<8x32xf32>
    %127 = math.tanh %126 : vector<8x32xf32>
    %128 = arith.mulf %123, %127 : vector<8x32xf32>
    %c7 = arith.constant 7 : index
    %c0_42 = arith.constant 0 : index
    %129 = tpu.strided_load %arg13[%c7, %c0_42] {strides = array<i32: 8, 1>} : memref<64x128xf32, #tpu.memory_space<vmem>>, vector<8x128xf32>
    %cst_43 = arith.constant dense<0.000000e+00> : vector<8x128xf32>
    %130 = tpu.matmul %128, %7, %cst_43 {dimension_numbers = #tpu.dot_dimension_numbers<[1], [0], [0], [1], [0, 0, 1, 1], [], []>} : vector<8x32xf32>, vector<32x128xf32>, vector<8x128xf32> -> vector<8x128xf32>
    %131 = arith.addf %129, %130 : vector<8x128xf32>
    %132 = math.tanh %131 : vector<8x128xf32>
    %cst_44 = arith.constant 5.000000e-01 : f32
    %133 = vector.broadcast %cst_44 : f32 to vector<8x128xf32>
    %134 = arith.mulf %133, %132 : vector<8x128xf32>
    %cst_45 = arith.constant 5.000000e-01 : f32
    %135 = vector.broadcast %cst_45 : f32 to vector<8x128xf32>
    %136 = arith.addf %134, %135 : vector<8x128xf32>
    %137 = vector.extract_strided_slice %136 {offsets = [0, 0], sizes = [8, 32], strides = [1, 1]} : vector<8x128xf32> to vector<8x32xf32>
    %138 = vector.extract_strided_slice %136 {offsets = [0, 32], sizes = [8, 32], strides = [1, 1]} : vector<8x128xf32> to vector<8x32xf32>
    %139 = vector.extract_strided_slice %132 {offsets = [0, 64], sizes = [8, 32], strides = [1, 1]} : vector<8x128xf32> to vector<8x32xf32>
    %140 = vector.extract_strided_slice %136 {offsets = [0, 96], sizes = [8, 32], strides = [1, 1]} : vector<8x128xf32> to vector<8x32xf32>
    %141 = arith.mulf %138, %126 : vector<8x32xf32>
    %142 = arith.mulf %137, %139 : vector<8x32xf32>
    %143 = arith.addf %141, %142 : vector<8x32xf32>
    %144 = math.tanh %143 : vector<8x32xf32>
    %145 = arith.mulf %140, %144 : vector<8x32xf32>
    %cst_46 = arith.constant 0.000000e+00 : f32
    %146 = vector.broadcast %cst_46 : f32 to vector<8x96xf32>
    %147 = tpu.concatenate %145, %146 in 1 : vector<8x32xf32>, vector<8x96xf32> -> vector<8x128xf32>
    %c0_47 = arith.constant 0 : index
    %c0_48 = arith.constant 0 : index
    %148 = vector.load %arg11[%c0_47, %c0_48] : memref<8x128xf32, #tpu.memory_space<vmem>>, vector<8x128xf32>
    tpu.vector_store %arg11[%c0_47, %c0_48], %147 {strides = array<i32>} : memref<8x128xf32, #tpu.memory_space<vmem>>, vector<8x128xf32>,
    %cst_49 = arith.constant 0.000000e+00 : f32
    %149 = vector.broadcast %cst_49 : f32 to vector<8x96xf32>
    %150 = tpu.concatenate %143, %149 in 1 : vector<8x32xf32>, vector<8x96xf32> -> vector<8x128xf32>
    %c0_50 = arith.constant 0 : index
    %c0_51 = arith.constant 0 : index
    %151 = vector.load %arg12[%c0_50, %c0_51] : memref<8x128xf32, #tpu.memory_space<vmem>>, vector<8x128xf32>
    tpu.vector_store %arg12[%c0_50, %c0_51], %150 {strides = array<i32>} : memref<8x128xf32, #tpu.memory_space<vmem>>, vector<8x128xf32>,
    %c0_52 = arith.constant 0 : index
    %c0_53 = arith.constant 0 : index
    %152 = vector.load %arg6[%c0_52, %c0_53] : memref<32x32xf32, #tpu.memory_space<vmem>>, vector<32x32xf32>
    %cst_54 = arith.constant dense<0.000000e+00> : vector<8x32xf32>
    %153 = tpu.matmul %145, %152, %cst_54 {dimension_numbers = #tpu.dot_dimension_numbers<[1], [0], [0], [1], [0, 0, 1, 1], [], []>} : vector<8x32xf32>, vector<32x32xf32>, vector<8x32xf32> -> vector<8x32xf32>
    %c0_55 = arith.constant 0 : index
    %c0_56 = arith.constant 0 : index
    %154 = vector.load %arg7[%c0_55, %c0_56] : memref<1x32xf32, #tpu.memory_space<vmem>>, vector<1x32xf32>
    %155 = vector.broadcast %154 : vector<1x32xf32> to vector<8x32xf32>
    %156 = arith.addf %153, %155 : vector<8x32xf32>
    %cst_57 = arith.constant 0.000000e+00 : f32
    %157 = vector.broadcast %cst_57 : f32 to vector<8x32xf32>
    %158 = arith.maximumf %156, %157 : vector<8x32xf32>
    %c0_58 = arith.constant 0 : index
    %c0_59 = arith.constant 0 : index
    %159 = vector.load %arg8[%c0_58, %c0_59] : memref<32x128xf32, #tpu.memory_space<vmem>>, vector<32x128xf32>
    %cst_60 = arith.constant dense<0.000000e+00> : vector<8x128xf32>
    %160 = tpu.matmul %158, %159, %cst_60 {dimension_numbers = #tpu.dot_dimension_numbers<[1], [0], [0], [1], [0, 0, 1, 1], [], []>} : vector<8x32xf32>, vector<32x128xf32>, vector<8x128xf32> -> vector<8x128xf32>
    %c0_61 = arith.constant 0 : index
    %c0_62 = arith.constant 0 : index
    %161 = vector.load %arg9[%c0_61, %c0_62] : memref<1x128xf32, #tpu.memory_space<vmem>>, vector<1x128xf32>
    %162 = vector.broadcast %161 : vector<1x128xf32> to vector<8x128xf32>
    %163 = arith.addf %160, %162 : vector<8x128xf32>
    %164 = math.tanh %163 : vector<8x128xf32>
    %c0_63 = arith.constant 0 : index
    %c0_64 = arith.constant 0 : index
    %165 = vector.load %arg10[%c0_63, %c0_64] : memref<8x128xf32, #tpu.memory_space<vmem>>, vector<8x128xf32>
    tpu.vector_store %arg10[%c0_63, %c0_64], %164 {strides = array<i32>} : memref<8x128xf32, #tpu.memory_space<vmem>>, vector<8x128xf32>,
    return
  }
}

</mosaic_0001>

<llo_original>
// kernel: _lambda_.1
$region0: #{_lambda_.1}
  #allocation0 [shape = 'u32[]', space=smem, size = 0x4, offset = 0x4, fixed_abs, tag = 'smem constant byte address 0x4 - core index']
  #allocation1 [shape = 'u32[144,128]{1,0:T(1,128)}', space=vmem, size = 0x12000, scoped, tag = 'internal scratch']
  #allocation2 [shape = 'f32[64,128]{1,0:T(8,128)}', space=vmem, size = 0x8000, scoped, tag = 'scratch operand']
  %s0 = inlined_call_operand.hbm [shape: f32[64,16], index: 0, kind: input, shape index: {}]
  %s1 = inlined_call_operand.vmem [shape: f32[8,32], index: 1, kind: input, shape index: {}]
  %s2 = inlined_call_operand.hbm [shape: f32[8,32], index: 2, kind: input, shape index: {}]
  %s3 = inlined_call_operand.hbm [shape: f32[16,128], index: 3, kind: input, shape index: {}]
  %s4 = inlined_call_operand.hbm [shape: f32[32,128], index: 4, kind: input, shape index: {}]
  %s5 = inlined_call_operand.hbm [shape: f32[1,128], index: 5, kind: input, shape index: {}]
  %s6 = inlined_call_operand.hbm [shape: f32[32,32], index: 6, kind: input, shape index: {}]
  %s7 = inlined_call_operand.hbm [shape: f32[1,32], index: 7, kind: input, shape index: {}]
  %s8 = inlined_call_operand.vmem [shape: f32[32,128], index: 8, kind: input, shape index: {}]
  %s9 = inlined_call_operand.vmem [shape: f32[1,128], index: 9, kind: input, shape index: {}]
  %s10 = inlined_call_operand.vmem [shape: f32[8,128], index: 10, kind: output, shape index: {0}]
  %s11 = inlined_call_operand.vmem [shape: f32[8,128], index: 11, kind: output, shape index: {1}]
  %s12 = inlined_call_operand.vmem [shape: f32[8,128], index: 12, kind: output, shape index: {2}]
  %13 = xla_tuple %s10, %s11, %s12
  %s14 = sld [smem:[#allocation0]]
  $region94: #{_lambda_.1} parent=0
    _
  %s16 = ssub.s32 1, %s14
  %s17 = scalar_select 0, %s16, %s14
  $region1: #{_lambda_.1} parent=0
    #allocation3 [shape = 'u8[32768]{0}', space=vmem, size = 0x8000, scoped, tag = 'input window, operand 0, single buffered']
    #allocation4 [shape = 's32[1]{0}', space=sflag, size = 0x4, scoped, tag = 'scoped memory for _lambda_.1']
    #allocation5 [shape = 'u8[4096]{0}', space=vmem, size = 0x1000, scoped, tag = 'input window, operand 2, single buffered']
    #allocation6 [shape = 's32[1]{0}', space=sflag, size = 0x4, scoped, tag = 'scoped memory for _lambda_.1']
    #allocation7 [shape = 'u8[8192]{0}', space=vmem, size = 0x2000, scoped, tag = 'input window, operand 3, single buffered']
    #allocation8 [shape = 'u8[16384]{0}', space=vmem, size = 0x4000, scoped, tag = 'input window, operand 4, single buffered']
    #allocation9 [shape = 's32[1]{0}', space=sflag, size = 0x4, scoped, tag = 'scoped memory for _lambda_.1']
    #allocation10 [shape = 'u8[512]{0}', space=vmem, size = 0x400, scoped, tag = 'input window, operand 5, single buffered']
    #allocation11 [shape = 'u8[16384]{0}', space=vmem, size = 0x4000, scoped, tag = 'input window, operand 6, single buffered']
    #allocation12 [shape = 's32[1]{0}', space=sflag, size = 0x4, scoped, tag = 'scoped memory for _lambda_.1']
    #allocation13 [shape = 'u8[512]{0}', space=vmem, size = 0x400, scoped, tag = 'input window, operand 7, single buffered']
    %18 = vsyncpa [#allocation4], 0
    %19 = vsyncpa [#allocation6], 0
    %20 = vsyncpa [#allocation9], 0
    %21 = vsyncpa [#allocation12], 0
    // Predicated region
    $region2: #{_lambda_.1} parent=1 // pred_check
      _
    $region3: #{_lambda_.1} parent=1 // pred_check_branch
      %23 = sbr.rel (0) target = $region5
    $region4: #{_lambda_.1} parent=1 // pred_region
      %s25 = ssub.s32 1024, 1024
      %26 = vsyncadd [#allocation4], %s25
      %s27 = sshll.u32 [#allocation3], 4
      %s28 = int_to_ptr.vmem [resolvable:$true] %s27
      %33 = dma.hbm_to_vmem [thread:$0]  %s0, 1024, %s28, [#allocation4], 128, 128, 8
    $region5: #{_lambda_.1} parent=1 // pred_fallthru
      _
    // Predicated region
    $region6: #{_lambda_.1} parent=1 // pred_check
      _
    $region7: #{_lambda_.1} parent=1 // pred_check_branch
      %35 = sbr.rel (0) target = $region9
    $region8: #{_lambda_.1} parent=1 // pred_region
      _
    $region9: #{_lambda_.1} parent=1 // pred_fallthru
      _
    // Predicated region
    $region10: #{_lambda_.1} parent=1 // pred_check
      _
    $region11: #{_lambda_.1} parent=1 // pred_check_branch
      %37 = sbr.rel (0) target = $region13
    $region12: #{_lambda_.1} parent=1 // pred_region
      %s39 = ssub.s32 128, 128
      %40 = vsyncadd [#allocation6], %s39
      %s42 = sshll.u32 [#allocation5], 4
      %s43 = int_to_ptr.vmem [resolvable:$true] %s42
      %45 = dma.hbm_to_vmem [thread:$0]  %s2, 128, %s43, [#allocation6]
    $region13: #{_lambda_.1} parent=1 // pred_fallthru
      _
    // Predicated region
    $region14: #{_lambda_.1} parent=1 // pred_check
      _
    $region15: #{_lambda_.1} parent=1 // pred_check_branch
      %47 = sbr.rel (0) target = $region17
    $region16: #{_lambda_.1} parent=1 // pred_region
      %s49 = ssub.s32 256, 256
      %50 = vsyncadd [#allocation6], %s49
      %s51 = sshll.u32 [#allocation7], 4
      %s52 = int_to_ptr.vmem [resolvable:$true] %s51
      %57 = dma.hbm_to_vmem [thread:$0]  %s3, 256, %s52, [#allocation6], 128, 128, 8
    $region17: #{_lambda_.1} parent=1 // pred_fallthru
      _
    // Predicated region
    $region18: #{_lambda_.1} parent=1 // pred_check
      _
    $region19: #{_lambda_.1} parent=1 // pred_check_branch
      %59 = sbr.rel (0) target = $region21
    $region20: #{_lambda_.1} parent=1 // pred_region
      %s61 = ssub.s32 512, 512
      %62 = vsyncadd [#allocation9], %s61
      %s63 = sshll.u32 [#allocation8], 4
      %s64 = int_to_ptr.vmem [resolvable:$true] %s63
      %69 = dma.hbm_to_vmem [thread:$0]  %s4, 512, %s64, [#allocation9], 128, 128, 8
    $region21: #{_lambda_.1} parent=1 // pred_fallthru
      _
    // Predicated region
    $region22: #{_lambda_.1} parent=1 // pred_check
      _
    $region23: #{_lambda_.1} parent=1 // pred_check_branch
      %71 = sbr.rel (0) target = $region25
    $region24: #{_lambda_.1} parent=1 // pred_region
      %s73 = ssub.s32 16, 16
      %74 = vsyncadd [#allocation9], %s73
      %s76 = sshll.u32 [#allocation10], 4
      %s77 = int_to_ptr.vmem [resolvable:$true] %s76
      %79 = dma.hbm_to_vmem [thread:$0]  %s5, 16, %s77, [#allocation9]
    $region25: #{_lambda_.1} parent=1 // pred_fallthru
      _
    // Predicated region
    $region26: #{_lambda_.1} parent=1 // pred_check
      _
    $region27: #{_lambda_.1} parent=1 // pred_check_branch
      %81 = sbr.rel (0) target = $region29
    $region28: #{_lambda_.1} parent=1 // pred_region
      %s83 = ssub.s32 512, 512
      %84 = vsyncadd [#allocation12], %s83
      %s85 = sshll.u32 [#allocation11], 4
      %s86 = int_to_ptr.vmem [resolvable:$true] %s85
      %91 = dma.hbm_to_vmem [thread:$0]  %s6, 512, %s86, [#allocation12], 128, 128, 8
    $region29: #{_lambda_.1} parent=1 // pred_fallthru
      _
    // Predicated region
    $region30: #{_lambda_.1} parent=1 // pred_check
      _
    $region31: #{_lambda_.1} parent=1 // pred_check_branch
      %93 = sbr.rel (0) target = $region33
    $region32: #{_lambda_.1} parent=1 // pred_region
      %s95 = ssub.s32 16, 16
      %96 = vsyncadd [#allocation12], %s95
      %s98 = sshll.u32 [#allocation13], 4
      %s99 = int_to_ptr.vmem [resolvable:$true] %s98
      %101 = dma.hbm_to_vmem [thread:$0]  %s7, 16, %s99, [#allocation12]
    $region33: #{_lambda_.1} parent=1 // pred_fallthru
      _
    // Predicated region
    $region34: #{_lambda_.1} parent=1 // pred_check
      _
    $region35: #{_lambda_.1} parent=1 // pred_check_branch
      %103 = sbr.rel (0) target = $region37
    $region36: #{_lambda_.1} parent=1 // pred_region
      _
    $region37: #{_lambda_.1} parent=1 // pred_fallthru
      _
    // Predicated region
    $region38: #{_lambda_.1} parent=1 // pred_check
      _
    $region39: #{_lambda_.1} parent=1 // pred_check_branch
      %105 = sbr.rel (0) target = $region41
    $region40: #{_lambda_.1} parent=1 // pred_region
      _
    $region41: #{_lambda_.1} parent=1 // pred_fallthru
      _
    // Predicated region
    $region42: #{_lambda_.1} parent=1 // pred_check
      _
    $region43: #{_lambda_.1} parent=1 // pred_check_branch
      %107 = sbr.rel (0) target = $region45
    $region44: #{_lambda_.1} parent=1 // pred_region
      %108 = dma.done [#allocation4], 1024
    $region45: #{_lambda_.1} parent=1 // pred_fallthru
      _
    // Predicated region
    $region46: #{_lambda_.1} parent=1 // pred_check
      _
    $region47: #{_lambda_.1} parent=1 // pred_check_branch
      %110 = sbr.rel (0) target = $region49
    $region48: #{_lambda_.1} parent=1 // pred_region
      %111 = dma.done [#allocation6], 128
    $region49: #{_lambda_.1} parent=1 // pred_fallthru
      _
    // Predicated region
    $region50: #{_lambda_.1} parent=1 // pred_check
      _
    $region51: #{_lambda_.1} parent=1 // pred_check_branch
      %113 = sbr.rel (0) target = $region53
    $region52: #{_lambda_.1} parent=1 // pred_region
      %114 = dma.done [#allocation6], 256
    $region53: #{_lambda_.1} parent=1 // pred_fallthru
      _
    // Predicated region
    $region54: #{_lambda_.1} parent=1 // pred_check
      _
    $region55: #{_lambda_.1} parent=1 // pred_check_branch
      %116 = sbr.rel (0) target = $region57
    $region56: #{_lambda_.1} parent=1 // pred_region
      %117 = dma.done [#allocation9], 512
    $region57: #{_lambda_.1} parent=1 // pred_fallthru
      _
    // Predicated region
    $region58: #{_lambda_.1} parent=1 // pred_check
      _
    $region59: #{_lambda_.1} parent=1 // pred_check_branch
      %119 = sbr.rel (0) target = $region61
    $region60: #{_lambda_.1} parent=1 // pred_region
      %120 = dma.done [#allocation9], 16
    $region61: #{_lambda_.1} parent=1 // pred_fallthru
      _
    // Predicated region
    $region62: #{_lambda_.1} parent=1 // pred_check
      _
    $region63: #{_lambda_.1} parent=1 // pred_check_branch
      %122 = sbr.rel (0) target = $region65
    $region64: #{_lambda_.1} parent=1 // pred_region
      %123 = dma.done [#allocation12], 512
    $region65: #{_lambda_.1} parent=1 // pred_fallthru
      _
    // Predicated region
    $region66: #{_lambda_.1} parent=1 // pred_check
      _
    $region67: #{_lambda_.1} parent=1 // pred_check_branch
      %125 = sbr.rel (0) target = $region69
    $region68: #{_lambda_.1} parent=1 // pred_region
      %126 = dma.done [#allocation12], 16
    $region69: #{_lambda_.1} parent=1 // pred_fallthru
      _
    %v127 = vld [vmem:[#allocation3] sm:$0xff]
    %v128 = vld [vmem:[#allocation3 + $0x8] sm:$0xff]
    %v129 = vld [vmem:[#allocation3 + $0x10] sm:$0xff]
    %v130 = vld [vmem:[#allocation3 + $0x18] sm:$0xff]
    %v131 = vld [vmem:[#allocation3 + $0x20] sm:$0xff]
    %v132 = vld [vmem:[#allocation3 + $0x28] sm:$0xff]
    %v133 = vld [vmem:[#allocation3 + $0x30] sm:$0xff]
    %v134 = vld [vmem:[#allocation3 + $0x38] sm:$0xff]
    %v135 = vld [vmem:[#allocation7] sm:$0xff]
    %v136 = vld [vmem:[#allocation7 + $0x8] sm:$0xff]
    %v137 = vld [vmem:[#allocation10] sm:$0x1]
    %v139 = vlaneseq
    %v140 = vshrl.u32 %v139, 7
    %v141 = vsub.s32 0, %v140
    %v142 = vrot.slane %v137, %v141
    %vm144 = vcmask 130048
    %v146 = vsel %vm144, %v127, 0
    %v149 = vsel %vm144, %v128, 0
    %v152 = vsel %vm144, %v129, 0
    %v155 = vsel %vm144, %v130, 0
    %v158 = vsel %vm144, %v131, 0
    %v161 = vsel %vm144, %v132, 0
    %v164 = vsel %vm144, %v133, 0
    %v167 = vsel %vm144, %v134, 0
    %169 = vmatprep.subr.mxu0 0.0
    %170 = vmatpush1.msra.mxu0 %v135
    %171 = vmatprep.subr.mxu0 0.0
    %172 = vmatpush1.msra.mxu0 %v136
    %173 = vmatprep.subr.mxu0 0.0
    %174 = vmatpush1.msra.mxu0 0.0
    %175 = vmatprep.subr.mxu0 0.0
    %176 = vmatpush1.msra.mxu0 0.0
    %177 = vmatprep.subr.mxu0 0.0
    %178 = vmatpush1.msra.mxu0 0.0
    %179 = vmatprep.subr.mxu0 0.0
    %180 = vmatpush1.msra.mxu0 0.0
    %181 = vmatprep.subr.mxu0 0.0
    %182 = vmatpush1.msra.mxu0 0.0
    %183 = vmatprep.subr.mxu0 0.0
    %184 = vmatpush1.msra.mxu0 0.0
    %185 = vmatprep.subr.mxu0 0.0
    %186 = vmatpush1.msra.mxu0 0.0
    %187 = vmatprep.subr.mxu0 0.0
    %188 = vmatpush1.msra.mxu0 0.0
    %189 = vmatprep.subr.mxu0 0.0
    %190 = vmatpush1.msra.mxu0 0.0
    %191 = vmatprep.subr.mxu0 0.0
    %192 = vmatpush1.msra.mxu0 0.0
    %193 = vmatprep.subr.mxu0 0.0
    %194 = vmatpush1.msra.mxu0 0.0
    %195 = vmatprep.subr.mxu0 0.0
    %196 = vmatpush1.msra.mxu0 0.0
    %197 = vmatprep.subr.mxu0 0.0
    %198 = vmatpush1.msra.mxu0 0.0
    %199 = vmatprep.subr.mxu0 0.0
    %200 = vmatpush1.msra.mxu0 0.0
    %201 = vmatprep.subr.mxu0 0.0
    %202 = vmatpush1.msra.mxu0 0.0
    %203 = vmatprep.subr.mxu0 0.0
    %204 = vmatpush1.msra.mxu0 0.0
    %205 = vmatprep.subr.mxu0 0.0
    %206 = vmatpush1.msra.mxu0 0.0
    %207 = vmatprep.subr.mxu0 0.0
    %208 = vmatpush1.msra.mxu0 0.0
    %209 = vmatprep.subr.mxu0 0.0
    %210 = vmatpush1.msra.mxu0 0.0
    %211 = vmatprep.subr.mxu0 0.0
    %212 = vmatpush1.msra.mxu0 0.0
    %213 = vmatprep.subr.mxu0 0.0
    %214 = vmatpush1.msra.mxu0 0.0
    %215 = vmatprep.subr.mxu0 0.0
    %216 = vmatpush1.msra.mxu0 0.0
    %217 = vmatprep.subr.mxu0 0.0
    %218 = vmatpush1.msra.mxu0 0.0
    %219 = vmatprep.subr.mxu0 0.0
    %220 = vmatpush1.msra.mxu0 0.0
    %221 = vmatprep.subr.mxu0 0.0
    %222 = vmatpush1.msra.mxu0 0.0
    %223 = vmatprep.subr.mxu0 0.0
    %224 = vmatpush1.msra.mxu0 0.0
    %225 = vmatprep.subr.mxu0 0.0
    %226 = vmatpush1.msra.mxu0 0.0
    %227 = vmatprep.subr.mxu0 0.0
    %228 = vmatpush1.msra.mxu0 0.0
    %229 = vmatprep.subr.mxu0 0.0
    %230 = vmatpush1.msra.mxu0 0.0
    %231 = vmatprep.subr.mxu0 0.0
    %232 = vmatpush1.msra.mxu0 0.0
    %233 = vmatprep.mubr.f32.mxu0 0.0
    %234 = vmatmul.mubr.f32.gmra.mrb[0].mxu0 %v146
    %v235 = vpop.f32.mrb[0].mxu0
    %v236 = vadd.f32 %v142, %v235
    %v237 = vpop.f32.mrb[0].mxu0
    %238 = vmatprep.mubr.f32.mxu0 0.0
    %239 = vmatmul.mubr.f32.gmra.mrb[0].mxu0 %v149
    %v240 = vpop.f32.mrb[0].mxu0
    %v241 = vadd.f32 %v142, %v240
    %v242 = vpop.f32.mrb[0].mxu0
    %243 = vmatprep.mubr.f32.mxu0 0.0
    %244 = vmatmul.mubr.f32.gmra.mrb[0].mxu0 %v152
    %v245 = vpop.f32.mrb[0].mxu0
    %v246 = vadd.f32 %v142, %v245
    %v247 = vpop.f32.mrb[0].mxu0
    %248 = vmatprep.mubr.f32.mxu0 0.0
    %249 = vmatmul.mubr.f32.gmra.mrb[0].mxu0 %v155
    %v250 = vpop.f32.mrb[0].mxu0
    %v251 = vadd.f32 %v142, %v250
    %v252 = vpop.f32.mrb[0].mxu0
    %253 = vmatprep.mubr.f32.mxu0 0.0
    %254 = vmatmul.mubr.f32.gmra.mrb[0].mxu0 %v158
    %v255 = vpop.f32.mrb[0].mxu0
    %v256 = vadd.f32 %v142, %v255
    %v257 = vpop.f32.mrb[0].mxu0
    %258 = vmatprep.mubr.f32.mxu0 0.0
    %259 = vmatmul.mubr.f32.gmra.mrb[0].mxu0 %v161
    %v260 = vpop.f32.mrb[0].mxu0
    %v261 = vadd.f32 %v142, %v260
    %v262 = vpop.f32.mrb[0].mxu0
    %263 = vmatprep.mubr.f32.mxu0 0.0
    %264 = vmatmul.mubr.f32.gmra.mrb[0].mxu0 %v164
    %v265 = vpop.f32.mrb[0].mxu0
    %v266 = vadd.f32 %v142, %v265
    %v267 = vpop.f32.mrb[0].mxu0
    %268 = vmatprep.mubr.f32.mxu0 0.0
    %269 = vmatmul.mubr.f32.gmra.mrb[0].mxu0 %v167
    %v270 = vpop.f32.mrb[0].mxu0
    %v271 = vadd.f32 %v142, %v270
    %v272 = vpop.f32.mrb[0].mxu0
    %273 = vdwg.mxu0
    %274 = vst [vmem:[#allocation2] sm:$0xff] %v236
    %275 = vst [vmem:[#allocation2 + $0x8] sm:$0xff] %v241
    %276 = vst [vmem:[#allocation2 + $0x10] sm:$0xff] %v246
    %277 = vst [vmem:[#allocation2 + $0x18] sm:$0xff] %v251
    %278 = vst [vmem:[#allocation2 + $0x20] sm:$0xff] %v256
    %279 = vst [vmem:[#allocation2 + $0x28] sm:$0xff] %v261
    %280 = vst [vmem:[#allocation2 + $0x30] sm:$0xff] %v266
    %281 = vst [vmem:[#allocation2 + $0x38] sm:$0xff] %v271
    %v282 = vld [vmem:[#allocation8] sm:$0xff]
    %v283 = vld [vmem:[#allocation8 + $0x8] sm:$0xff]
    %v284 = vld [vmem:[#allocation8 + $0x10] sm:$0xff]
    %v285 = vld [vmem:[#allocation8 + $0x18] sm:$0xff]
    %v286 = vld [vmem:[%s1] sm:$0xff]
    %v287 = vld [vmem:[#allocation5] sm:$0xff]
    %v288 = vld [vmem:[#allocation2] ss:$8 sm:$0xf]
    %v289 = vld [vmem:[#allocation2] ss:$8 sm:$0xf0]
    %v290 = vor.u32 %v288, %v289
    %vm291 = vcmask 261120
    %v293 = vsel %vm291, %v286, 0
    %295 = vmatprep.subr.mxu0 0.0
    %296 = vmatpush1.msra.mxu0 %v282
    %297 = vmatprep.subr.mxu0 0.0
    %298 = vmatpush1.msra.mxu0 %v283
    %299 = vmatprep.subr.mxu0 0.0
    %300 = vmatpush1.msra.mxu0 %v284
    %301 = vmatprep.subr.mxu0 0.0
    %302 = vmatpush1.msra.mxu0 %v285
    %303 = vmatprep.subr.mxu0 0.0
    %304 = vmatpush1.msra.mxu0 0.0
    %305 = vmatprep.subr.mxu0 0.0
    %306 = vmatpush1.msra.mxu0 0.0
    %307 = vmatprep.subr.mxu0 0.0
    %308 = vmatpush1.msra.mxu0 0.0
    %309 = vmatprep.subr.mxu0 0.0
    %310 = vmatpush1.msra.mxu0 0.0
    %311 = vmatprep.subr.mxu0 0.0
    %312 = vmatpush1.msra.mxu0 0.0
    %313 = vmatprep.subr.mxu0 0.0
    %314 = vmatpush1.msra.mxu0 0.0
    %315 = vmatprep.subr.mxu0 0.0
    %316 = vmatpush1.msra.mxu0 0.0
    %317 = vmatprep.subr.mxu0 0.0
    %318 = vmatpush1.msra.mxu0 0.0
    %319 = vmatprep.subr.mxu0 0.0
    %320 = vmatpush1.msra.mxu0 0.0
    %321 = vmatprep.subr.mxu0 0.0
    %322 = vmatpush1.msra.mxu0 0.0
    %323 = vmatprep.subr.mxu0 0.0
    %324 = vmatpush1.msra.mxu0 0.0
    %325 = vmatprep.subr.mxu0 0.0
    %326 = vmatpush1.msra.mxu0 0.0
    %327 = vmatprep.subr.mxu0 0.0
    %328 = vmatpush1.msra.mxu0 0.0
    %329 = vmatprep.subr.mxu0 0.0
    %330 = vmatpush1.msra.mxu0 0.0
    %331 = vmatprep.subr.mxu0 0.0
    %332 = vmatpush1.msra.mxu0 0.0
    %333 = vmatprep.subr.mxu0 0.0
    %334 = vmatpush1.msra.mxu0 0.0
    %335 = vmatprep.subr.mxu0 0.0
    %336 = vmatpush1.msra.mxu0 0.0
    %337 = vmatprep.subr.mxu0 0.0
    %338 = vmatpush1.msra.mxu0 0.0
    %339 = vmatprep.subr.mxu0 0.0
    %340 = vmatpush1.msra.mxu0 0.0
    %341 = vmatprep.subr.mxu0 0.0
    %342 = vmatpush1.msra.mxu0 0.0
    %343 = vmatprep.subr.mxu0 0.0
    %344 = vmatpush1.msra.mxu0 0.0
    %345 = vmatprep.subr.mxu0 0.0
    %346 = vmatpush1.msra.mxu0 0.0
    %347 = vmatprep.subr.mxu0 0.0
    %348 = vmatpush1.msra.mxu0 0.0
    %349 = vmatprep.subr.mxu0 0.0
    %350 = vmatpush1.msra.mxu0 0.0
    %351 = vmatprep.subr.mxu0 0.0
    %352 = vmatpush1.msra.mxu0 0.0
    %353 = vmatprep.subr.mxu0 0.0
    %354 = vmatpush1.msra.mxu0 0.0
    %355 = vmatprep.subr.mxu0 0.0
    %356 = vmatpush1.msra.mxu0 0.0
    %357 = vmatprep.subr.mxu0 0.0
    %358 = vmatpush1.msra.mxu0 0.0
    %359 = vmatprep.mubr.f32.mxu0 0.0
    %360 = vmatmul.mubr.f32.gmra.mrb[0].mxu0 %v293
    %v361 = vpop.f32.mrb[0].mxu0
    %v362 = vadd.f32 0.0, %v361
    %v363 = vpop.f32.mrb[0].mxu0
    %364 = vdwg.mxu0
    %v365 = vadd.f32 %v290, %v362
    %v366 = vtanh.pop %v365
    %v367 = vmul.f32 %v366, 0.5
    %v368 = vadd.f32 %v367, 0.5
    %370 = vrot.lane.b32.xlu0 %v287, 32
    %v371 = vpop.permute.xlu0 %370
    %v373 = vmul.f32 %v368, %v371
    %375 = vrot.lane.b32.xlu0 %v366, 64
    %v376 = vpop.permute.xlu0 %375
    %v378 = vmul.f32 %v368, %v376
    %380 = vrot.lane.b32.xlu0 %v378, 32
    %v381 = vpop.permute.xlu0 %380
    %v383 = vadd.f32 %v373, %v381
    %v384 = vtanh.pop %v383
    %386 = vrot.lane.b32.xlu0 %v384, 64
    %v387 = vpop.permute.xlu0 %386
    %v389 = vmul.f32 %v368, %v387
    %s390 = scalar_lea.vmem [#allocation2], 1
    %v391 = vld [vmem:[%s390] ss:$8 sm:$0xf]
    %v392 = vld [vmem:[%s390] ss:$8 sm:$0xf0]
    %v393 = vor.u32 %v391, %v392
    %395 = vrot.lane.b32.xlu0 %v389, 32
    %v396 = vpop.permute.xlu0 %395
    %v397 = vsel %vm291, %v396, 0
    %399 = vmatprep.subr.mxu0 0.0
    %400 = vmatpush1.msra.mxu0 %v282
    %401 = vmatprep.subr.mxu0 0.0
    %402 = vmatpush1.msra.mxu0 %v283
    %403 = vmatprep.subr.mxu0 0.0
    %404 = vmatpush1.msra.mxu0 %v284
    %405 = vmatprep.subr.mxu0 0.0
    %406 = vmatpush1.msra.mxu0 %v285
    %407 = vmatprep.subr.mxu0 0.0
    %408 = vmatpush1.msra.mxu0 0.0
    %409 = vmatprep.subr.mxu0 0.0
    %410 = vmatpush1.msra.mxu0 0.0
    %411 = vmatprep.subr.mxu0 0.0
    %412 = vmatpush1.msra.mxu0 0.0
    %413 = vmatprep.subr.mxu0 0.0
    %414 = vmatpush1.msra.mxu0 0.0
    %415 = vmatprep.subr.mxu0 0.0
    %416 = vmatpush1.msra.mxu0 0.0
    %417 = vmatprep.subr.mxu0 0.0
    %418 = vmatpush1.msra.mxu0 0.0
    %419 = vmatprep.subr.mxu0 0.0
    %420 = vmatpush1.msra.mxu0 0.0
    %421 = vmatprep.subr.mxu0 0.0
    %422 = vmatpush1.msra.mxu0 0.0
    %423 = vmatprep.subr.mxu0 0.0
    %424 = vmatpush1.msra.mxu0 0.0
    %425 = vmatprep.subr.mxu0 0.0
    %426 = vmatpush1.msra.mxu0 0.0
    %427 = vmatprep.subr.mxu0 0.0
    %428 = vmatpush1.msra.mxu0 0.0
    %429 = vmatprep.subr.mxu0 0.0
    %430 = vmatpush1.msra.mxu0 0.0
    %431 = vmatprep.subr.mxu0 0.0
    %432 = vmatpush1.msra.mxu0 0.0
    %433 = vmatprep.subr.mxu0 0.0
    %434 = vmatpush1.msra.mxu0 0.0
    %435 = vmatprep.subr.mxu0 0.0
    %436 = vmatpush1.msra.mxu0 0.0
    %437 = vmatprep.subr.mxu0 0.0
    %438 = vmatpush1.msra.mxu0 0.0
    %439 = vmatprep.subr.mxu0 0.0
    %440 = vmatpush1.msra.mxu0 0.0
    %441 = vmatprep.subr.mxu0 0.0
    %442 = vmatpush1.msra.mxu0 0.0
    %443 = vmatprep.subr.mxu0 0.0
    %444 = vmatpush1.msra.mxu0 0.0
    %445 = vmatprep.subr.mxu0 0.0
    %446 = vmatpush1.msra.mxu0 0.0
    %447 = vmatprep.subr.mxu0 0.0
    %448 = vmatpush1.msra.mxu0 0.0
    %449 = vmatprep.subr.mxu0 0.0
    %450 = vmatpush1.msra.mxu0 0.0
    %451 = vmatprep.subr.mxu0 0.0
    %452 = vmatpush1.msra.mxu0 0.0
    %453 = vmatprep.subr.mxu0 0.0
    %454 = vmatpush1.msra.mxu0 0.0
    %455 = vmatprep.subr.mxu0 0.0
    %456 = vmatpush1.msra.mxu0 0.0
    %457 = vmatprep.subr.mxu0 0.0
    %458 = vmatpush1.msra.mxu0 0.0
    %459 = vmatprep.subr.mxu0 0.0
    %460 = vmatpush1.msra.mxu0 0.0
    %461 = vmatprep.subr.mxu0 0.0
    %462 = vmatpush1.msra.mxu0 0.0
    %463 = vmatprep.mubr.f32.mxu0 0.0
    %464 = vmatmul.mubr.f32.gmra.mrb[0].mxu0 %v397
    %v465 = vpop.f32.mrb[0].mxu0
    %v466 = vadd.f32 0.0, %v465
    %v467 = vpop.f32.mrb[0].mxu0
    %468 = vdwg.mxu0
    %v469 = vadd.f32 %v393, %v466
    %v470 = vtanh.pop %v469
    %v471 = vmul.f32 %v470, 0.5
    %v472 = vadd.f32 %v471, 0.5
    %v473 = vmul.f32 %v472, %v383
    %475 = vrot.lane.b32.xlu0 %v470, 64
    %v476 = vpop.permute.xlu0 %475
    %v478 = vmul.f32 %v472, %v476
    %480 = vrot.lane.b32.xlu0 %v478, 32
    %v481 = vpop.permute.xlu0 %480
    %v483 = vadd.f32 %v473, %v481
    %v484 = vtanh.pop %v483
    %486 = vrot.lane.b32.xlu0 %v484, 64
    %v487 = vpop.permute.xlu0 %486
    %v489 = vmul.f32 %v472, %v487
    %s490 = scalar_lea.vmem [#allocation2], 2
    %v491 = vld [vmem:[%s490] ss:$8 sm:$0xf]
    %v492 = vld [vmem:[%s490] ss:$8 sm:$0xf0]
    %v493 = vor.u32 %v491, %v492
    %495 = vrot.lane.b32.xlu0 %v489, 32
    %v496 = vpop.permute.xlu0 %495
    %v497 = vsel %vm291, %v496, 0
    %499 = vmatprep.subr.mxu0 0.0
    %500 = vmatpush1.msra.mxu0 %v282
    %501 = vmatprep.subr.mxu0 0.0
    %502 = vmatpush1.msra.mxu0 %v283
    %503 = vmatprep.subr.mxu0 0.0
    %504 = vmatpush1.msra.mxu0 %v284
    %505 = vmatprep.subr.mxu0 0.0
    %506 = vmatpush1.msra.mxu0 %v285
    %507 = vmatprep.subr.mxu0 0.0
    %508 = vmatpush1.msra.mxu0 0.0
    %509 = vmatprep.subr.mxu0 0.0
    %510 = vmatpush1.msra.mxu0 0.0
    %511 = vmatprep.subr.mxu0 0.0
    %512 = vmatpush1.msra.mxu0 0.0
    %513 = vmatprep.subr.mxu0 0.0
    %514 = vmatpush1.msra.mxu0 0.0
    %515 = vmatprep.subr.mxu0 0.0
    %516 = vmatpush1.msra.mxu0 0.0
    %517 = vmatprep.subr.mxu0 0.0
    %518 = vmatpush1.msra.mxu0 0.0
    %519 = vmatprep.subr.mxu0 0.0
    %520 = vmatpush1.msra.mxu0 0.0
    %521 = vmatprep.subr.mxu0 0.0
    %522 = vmatpush1.msra.mxu0 0.0
    %523 = vmatprep.subr.mxu0 0.0
    %524 = vmatpush1.msra.mxu0 0.0
    %525 = vmatprep.subr.mxu0 0.0
    %526 = vmatpush1.msra.mxu0 0.0
    %527 = vmatprep.subr.mxu0 0.0
    %528 = vmatpush1.msra.mxu0 0.0
    %529 = vmatprep.subr.mxu0 0.0
    %530 = vmatpush1.msra.mxu0 0.0
    %531 = vmatprep.subr.mxu0 0.0
    %532 = vmatpush1.msra.mxu0 0.0
    %533 = vmatprep.subr.mxu0 0.0
    %534 = vmatpush1.msra.mxu0 0.0
    %535 = vmatprep.subr.mxu0 0.0
    %536 = vmatpush1.msra.mxu0 0.0
    %537 = vmatprep.subr.mxu0 0.0
    %538 = vmatpush1.msra.mxu0 0.0
    %539 = vmatprep.subr.mxu0 0.0
    %540 = vmatpush1.msra.mxu0 0.0
    %541 = vmatprep.subr.mxu0 0.0
    %542 = vmatpush1.msra.mxu0 0.0
    %543 = vmatprep.subr.mxu0 0.0
    %544 = vmatpush1.msra.mxu0 0.0
    %545 = vmatprep.subr.mxu0 0.0
    %546 = vmatpush1.msra.mxu0 0.0
    %547 = vmatprep.subr.mxu0 0.0
    %548 = vmatpush1.msra.mxu0 0.0
    %549 = vmatprep.subr.mxu0 0.0
    %550 = vmatpush1.msra.mxu0 0.0
    %551 = vmatprep.subr.mxu0 0.0
    %552 = vmatpush1.msra.mxu0 0.0
    %553 = vmatprep.subr.mxu0 0.0
    %554 = vmatpush1.msra.mxu0 0.0
    %555 = vmatprep.subr.mxu0 0.0
    %556 = vmatpush1.msra.mxu0 0.0
    %557 = vmatprep.subr.mxu0 0.0
    %558 = vmatpush1.msra.mxu0 0.0
    %559 = vmatprep.subr.mxu0 0.0
    %560 = vmatpush1.msra.mxu0 0.0
    %561 = vmatprep.subr.mxu0 0.0
    %562 = vmatpush1.msra.mxu0 0.0
    %563 = vmatprep.mubr.f32.mxu0 0.0
    %564 = vmatmul.mubr.f32.gmra.mrb[0].mxu0 %v497
    %v565 = vpop.f32.mrb[0].mxu0
    %v566 = vadd.f32 0.0, %v565
    %v567 = vpop.f32.mrb[0].mxu0
    %568 = vdwg.mxu0
    %v569 = vadd.f32 %v493, %v566
    %v570 = vtanh.pop %v569
    %v571 = vmul.f32 %v570, 0.5
    %v572 = vadd.f32 %v571, 0.5
    %v573 = vmul.f32 %v572, %v483
    %575 = vrot.lane.b32.xlu0 %v570, 64
    %v576 = vpop.permute.xlu0 %575
    %v578 = vmul.f32 %v572, %v576
    %580 = vrot.lane.b32.xlu0 %v578, 32
    %v581 = vpop.permute.xlu0 %580
    %v583 = vadd.f32 %v573, %v581
    %v584 = vtanh.pop %v583
    %586 = vrot.lane.b32.xlu0 %v584, 64
    %v587 = vpop.permute.xlu0 %586
    %v589 = vmul.f32 %v572, %v587
    %s590 = scalar_lea.vmem [#allocation2], 3
    %v591 = vld [vmem:[%s590] ss:$8 sm:$0xf]
    %v592 = vld [vmem:[%s590] ss:$8 sm:$0xf0]
    %v593 = vor.u32 %v591, %v592
    %595 = vrot.lane.b32.xlu0 %v589, 32
    %v596 = vpop.permute.xlu0 %595
    %v597 = vsel %vm291, %v596, 0
    %599 = vmatprep.subr.mxu0 0.0
    %600 = vmatpush1.msra.mxu0 %v282
    %601 = vmatprep.subr.mxu0 0.0
    %602 = vmatpush1.msra.mxu0 %v283
    %603 = vmatprep.subr.mxu0 0.0
    %604 = vmatpush1.msra.mxu0 %v284
    %605 = vmatprep.subr.mxu0 0.0
    %606 = vmatpush1.msra.mxu0 %v285
    %607 = vmatprep.subr.mxu0 0.0
    %608 = vmatpush1.msra.mxu0 0.0
    %609 = vmatprep.subr.mxu0 0.0
    %610 = vmatpush1.msra.mxu0 0.0
    %611 = vmatprep.subr.mxu0 0.0
    %612 = vmatpush1.msra.mxu0 0.0
    %613 = vmatprep.subr.mxu0 0.0
    %614 = vmatpush1.msra.mxu0 0.0
    %615 = vmatprep.subr.mxu0 0.0
    %616 = vmatpush1.msra.mxu0 0.0
    %617 = vmatprep.subr.mxu0 0.0
    %618 = vmatpush1.msra.mxu0 0.0
    %619 = vmatprep.subr.mxu0 0.0
    %620 = vmatpush1.msra.mxu0 0.0
    %621 = vmatprep.subr.mxu0 0.0
    %622 = vmatpush1.msra.mxu0 0.0
    %623 = vmatprep.subr.mxu0 0.0
    %624 = vmatpush1.msra.mxu0 0.0
    %625 = vmatprep.subr.mxu0 0.0
    %626 = vmatpush1.msra.mxu0 0.0
    %627 = vmatprep.subr.mxu0 0.0
    %628 = vmatpush1.msra.mxu0 0.0
    %629 = vmatprep.subr.mxu0 0.0
    %630 = vmatpush1.msra.mxu0 0.0
    %631 = vmatprep.subr.mxu0 0.0
    %632 = vmatpush1.msra.mxu0 0.0
    %633 = vmatprep.subr.mxu0 0.0
    %634 = vmatpush1.msra.mxu0 0.0
    %635 = vmatprep.subr.mxu0 0.0
    %636 = vmatpush1.msra.mxu0 0.0
    %637 = vmatprep.subr.mxu0 0.0
    %638 = vmatpush1.msra.mxu0 0.0
    %639 = vmatprep.subr.mxu0 0.0
    %640 = vmatpush1.msra.mxu0 0.0
    %641 = vmatprep.subr.mxu0 0.0
    %642 = vmatpush1.msra.mxu0 0.0
    %643 = vmatprep.subr.mxu0 0.0
    %644 = vmatpush1.msra.mxu0 0.0
    %645 = vmatprep.subr.mxu0 0.0
    %646 = vmatpush1.msra.mxu0 0.0
    %647 = vmatprep.subr.mxu0 0.0
    %648 = vmatpush1.msra.mxu0 0.0
    %649 = vmatprep.subr.mxu0 0.0
    %650 = vmatpush1.msra.mxu0 0.0
    %651 = vmatprep.subr.mxu0 0.0
    %652 = vmatpush1.msra.mxu0 0.0
    %653 = vmatprep.subr.mxu0 0.0
    %654 = vmatpush1.msra.mxu0 0.0
    %655 = vmatprep.subr.mxu0 0.0
    %656 = vmatpush1.msra.mxu0 0.0
    %657 = vmatprep.subr.mxu0 0.0
    %658 = vmatpush1.msra.mxu0 0.0
    %659 = vmatprep.subr.mxu0 0.0
    %660 = vmatpush1.msra.mxu0 0.0
    %661 = vmatprep.subr.mxu0 0.0
    %662 = vmatpush1.msra.mxu0 0.0
    %663 = vmatprep.mubr.f32.mxu0 0.0
    %664 = vmatmul.mubr.f32.gmra.mrb[0].mxu0 %v597
    %v665 = vpop.f32.mrb[0].mxu0
    %v666 = vadd.f32 0.0, %v665
    %v667 = vpop.f32.mrb[0].mxu0
    %668 = vdwg.mxu0
    %v669 = vadd.f32 %v593, %v666
    %v670 = vtanh.pop %v669
    %v671 = vmul.f32 %v670, 0.5
    %v672 = vadd.f32 %v671, 0.5
    %v673 = vmul.f32 %v672, %v583
    %675 = vrot.lane.b32.xlu0 %v670, 64
    %v676 = vpop.permute.xlu0 %675
    %v678 = vmul.f32 %v672, %v676
    %680 = vrot.lane.b32.xlu0 %v678, 32
    %v681 = vpop.permute.xlu0 %680
    %v683 = vadd.f32 %v673, %v681
    %v684 = vtanh.pop %v683
    %686 = vrot.lane.b32.xlu0 %v684, 64
    %v687 = vpop.permute.xlu0 %686
    %v689 = vmul.f32 %v672, %v687
    %s690 = scalar_lea.vmem [#allocation2], 4
    %v691 = vld [vmem:[%s690] ss:$8 sm:$0xf]
    %v692 = vld [vmem:[%s690] ss:$8 sm:$0xf0]
    %v693 = vor.u32 %v691, %v692
    %695 = vrot.lane.b32.xlu0 %v689, 32
    %v696 = vpop.permute.xlu0 %695
    %v697 = vsel %vm291, %v696, 0
    %699 = vmatprep.subr.mxu0 0.0
    %700 = vmatpush1.msra.mxu0 %v282
    %701 = vmatprep.subr.mxu0 0.0
    %702 = vmatpush1.msra.mxu0 %v283
    %703 = vmatprep.subr.mxu0 0.0
    %704 = vmatpush1.msra.mxu0 %v284
    %705 = vmatprep.subr.mxu0 0.0
    %706 = vmatpush1.msra.mxu0 %v285
    %707 = vmatprep.subr.mxu0 0.0
    %708 = vmatpush1.msra.mxu0 0.0
    %709 = vmatprep.subr.mxu0 0.0
    %710 = vmatpush1.msra.mxu0 0.0
    %711 = vmatprep.subr.mxu0 0.0
    %712 = vmatpush1.msra.mxu0 0.0
    %713 = vmatprep.subr.mxu0 0.0
    %714 = vmatpush1.msra.mxu0 0.0
    %715 = vmatprep.subr.mxu0 0.0
    %716 = vmatpush1.msra.mxu0 0.0
    %717 = vmatprep.subr.mxu0 0.0
    %718 = vmatpush1.msra.mxu0 0.0
    %719 = vmatprep.subr.mxu0 0.0
    %720 = vmatpush1.msra.mxu0 0.0
    %721 = vmatprep.subr.mxu0 0.0
    %722 = vmatpush1.msra.mxu0 0.0
    %723 = vmatprep.subr.mxu0 0.0
    %724 = vmatpush1.msra.mxu0 0.0
    %725 = vmatprep.subr.mxu0 0.0
    %726 = vmatpush1.msra.mxu0 0.0
    %727 = vmatprep.subr.mxu0 0.0
    %728 = vmatpush1.msra.mxu0 0.0
    %729 = vmatprep.subr.mxu0 0.0
    %730 = vmatpush1.msra.mxu0 0.0
    %731 = vmatprep.subr.mxu0 0.0
    %732 = vmatpush1.msra.mxu0 0.0
    %733 = vmatprep.subr.mxu0 0.0
    %734 = vmatpush1.msra.mxu0 0.0
    %735 = vmatprep.subr.mxu0 0.0
    %736 = vmatpush1.msra.mxu0 0.0
    %737 = vmatprep.subr.mxu0 0.0
    %738 = vmatpush1.msra.mxu0 0.0
    %739 = vmatprep.subr.mxu0 0.0
    %740 = vmatpush1.msra.mxu0 0.0
    %741 = vmatprep.subr.mxu0 0.0
    %742 = vmatpush1.msra.mxu0 0.0
    %743 = vmatprep.subr.mxu0 0.0
    %744 = vmatpush1.msra.mxu0 0.0
    %745 = vmatprep.subr.mxu0 0.0
    %746 = vmatpush1.msra.mxu0 0.0
    %747 = vmatprep.subr.mxu0 0.0
    %748 = vmatpush1.msra.mxu0 0.0
    %749 = vmatprep.subr.mxu0 0.0
    %750 = vmatpush1.msra.mxu0 0.0
    %751 = vmatprep.subr.mxu0 0.0
    %752 = vmatpush1.msra.mxu0 0.0
    %753 = vmatprep.subr.mxu0 0.0
    %754 = vmatpush1.msra.mxu0 0.0
    %755 = vmatprep.subr.mxu0 0.0
    %756 = vmatpush1.msra.mxu0 0.0
    %757 = vmatprep.subr.mxu0 0.0
    %758 = vmatpush1.msra.mxu0 0.0
    %759 = vmatprep.subr.mxu0 0.0
    %760 = vmatpush1.msra.mxu0 0.0
    %761 = vmatprep.subr.mxu0 0.0
    %762 = vmatpush1.msra.mxu0 0.0
    %763 = vmatprep.mubr.f32.mxu0 0.0
    %764 = vmatmul.mubr.f32.gmra.mrb[0].mxu0 %v697
    %v765 = vpop.f32.mrb[0].mxu0
    %v766 = vadd.f32 0.0, %v765
    %v767 = vpop.f32.mrb[0].mxu0
    %768 = vdwg.mxu0
    %v769 = vadd.f32 %v693, %v766
    %v770 = vtanh.pop %v769
    %v771 = vmul.f32 %v770, 0.5
    %v772 = vadd.f32 %v771, 0.5
    %v773 = vmul.f32 %v772, %v683
    %775 = vrot.lane.b32.xlu0 %v770, 64
    %v776 = vpop.permute.xlu0 %775
    %v778 = vmul.f32 %v772, %v776
    %780 = vrot.lane.b32.xlu0 %v778, 32
    %v781 = vpop.permute.xlu0 %780
    %v783 = vadd.f32 %v773, %v781
    %v784 = vtanh.pop %v783
    %786 = vrot.lane.b32.xlu0 %v784, 64
    %v787 = vpop.permute.xlu0 %786
    %v789 = vmul.f32 %v772, %v787
    %s790 = scalar_lea.vmem [#allocation2], 5
    %v791 = vld [vmem:[%s790] ss:$8 sm:$0xf]
    %v792 = vld [vmem:[%s790] ss:$8 sm:$0xf0]
    %v793 = vor.u32 %v791, %v792
    %795 = vrot.lane.b32.xlu0 %v789, 32
    %v796 = vpop.permute.xlu0 %795
    %v797 = vsel %vm291, %v796, 0
    %799 = vmatprep.subr.mxu0 0.0
    %800 = vmatpush1.msra.mxu0 %v282
    %801 = vmatprep.subr.mxu0 0.0
    %802 = vmatpush1.msra.mxu0 %v283
    %803 = vmatprep.subr.mxu0 0.0
    %804 = vmatpush1.msra.mxu0 %v284
    %805 = vmatprep.subr.mxu0 0.0
    %806 = vmatpush1.msra.mxu0 %v285
    %807 = vmatprep.subr.mxu0 0.0
    %808 = vmatpush1.msra.mxu0 0.0
    %809 = vmatprep.subr.mxu0 0.0
    %810 = vmatpush1.msra.mxu0 0.0
    %811 = vmatprep.subr.mxu0 0.0
    %812 = vmatpush1.msra.mxu0 0.0
    %813 = vmatprep.subr.mxu0 0.0
    %814 = vmatpush1.msra.mxu0 0.0
    %815 = vmatprep.subr.mxu0 0.0
    %816 = vmatpush1.msra.mxu0 0.0
    %817 = vmatprep.subr.mxu0 0.0
    %818 = vmatpush1.msra.mxu0 0.0
    %819 = vmatprep.subr.mxu0 0.0
    %820 = vmatpush1.msra.mxu0 0.0
    %821 = vmatprep.subr.mxu0 0.0
    %822 = vmatpush1.msra.mxu0 0.0
    %823 = vmatprep.subr.mxu0 0.0
    %824 = vmatpush1.msra.mxu0 0.0
    %825 = vmatprep.subr.mxu0 0.0
    %826 = vmatpush1.msra.mxu0 0.0
    %827 = vmatprep.subr.mxu0 0.0
    %828 = vmatpush1.msra.mxu0 0.0
    %829 = vmatprep.subr.mxu0 0.0
    %830 = vmatpush1.msra.mxu0 0.0
    %831 = vmatprep.subr.mxu0 0.0
    %832 = vmatpush1.msra.mxu0 0.0
    %833 = vmatprep.subr.mxu0 0.0
    %834 = vmatpush1.msra.mxu0 0.0
    %835 = vmatprep.subr.mxu0 0.0
    %836 = vmatpush1.msra.mxu0 0.0
    %837 = vmatprep.subr.mxu0 0.0
    %838 = vmatpush1.msra.mxu0 0.0
    %839 = vmatprep.subr.mxu0 0.0
    %840 = vmatpush1.msra.mxu0 0.0
    %841 = vmatprep.subr.mxu0 0.0
    %842 = vmatpush1.msra.mxu0 0.0
    %843 = vmatprep.subr.mxu0 0.0
    %844 = vmatpush1.msra.mxu0 0.0
    %845 = vmatprep.subr.mxu0 0.0
    %846 = vmatpush1.msra.mxu0 0.0
    %847 = vmatprep.subr.mxu0 0.0
    %848 = vmatpush1.msra.mxu0 0.0
    %849 = vmatprep.subr.mxu0 0.0
    %850 = vmatpush1.msra.mxu0 0.0
    %851 = vmatprep.subr.mxu0 0.0
    %852 = vmatpush1.msra.mxu0 0.0
    %853 = vmatprep.subr.mxu0 0.0
    %854 = vmatpush1.msra.mxu0 0.0
    %855 = vmatprep.subr.mxu0 0.0
    %856 = vmatpush1.msra.mxu0 0.0
    %857 = vmatprep.subr.mxu0 0.0
    %858 = vmatpush1.msra.mxu0 0.0
    %859 = vmatprep.subr.mxu0 0.0
    %860 = vmatpush1.msra.mxu0 0.0
    %861 = vmatprep.subr.mxu0 0.0
    %862 = vmatpush1.msra.mxu0 0.0
    %863 = vmatprep.mubr.f32.mxu0 0.0
    %864 = vmatmul.mubr.f32.gmra.mrb[0].mxu0 %v797
    %v865 = vpop.f32.mrb[0].mxu0
    %v866 = vadd.f32 0.0, %v865
    %v867 = vpop.f32.mrb[0].mxu0
    %868 = vdwg.mxu0
    %v869 = vadd.f32 %v793, %v866
    %v870 = vtanh.pop %v869
    %v871 = vmul.f32 %v870, 0.5
    %v872 = vadd.f32 %v871, 0.5
    %v873 = vmul.f32 %v872, %v783
    %875 = vrot.lane.b32.xlu0 %v870, 64
    %v876 = vpop.permute.xlu0 %875
    %v878 = vmul.f32 %v872, %v876
    %880 = vrot.lane.b32.xlu0 %v878, 32
    %v881 = vpop.permute.xlu0 %880
    %v883 = vadd.f32 %v873, %v881
    %v884 = vtanh.pop %v883
    %886 = vrot.lane.b32.xlu0 %v884, 64
    %v887 = vpop.permute.xlu0 %886
    %v889 = vmul.f32 %v872, %v887
    %s890 = scalar_lea.vmem [#allocation2], 6
    %v891 = vld [vmem:[%s890] ss:$8 sm:$0xf]
    %v892 = vld [vmem:[%s890] ss:$8 sm:$0xf0]
    %v893 = vor.u32 %v891, %v892
    %895 = vrot.lane.b32.xlu0 %v889, 32
    %v896 = vpop.permute.xlu0 %895
    %v897 = vsel %vm291, %v896, 0
    %899 = vmatprep.subr.mxu0 0.0
    %900 = vmatpush1.msra.mxu0 %v282
    %901 = vmatprep.subr.mxu0 0.0
    %902 = vmatpush1.msra.mxu0 %v283
    %903 = vmatprep.subr.mxu0 0.0
    %904 = vmatpush1.msra.mxu0 %v284
    %905 = vmatprep.subr.mxu0 0.0
    %906 = vmatpush1.msra.mxu0 %v285
    %907 = vmatprep.subr.mxu0 0.0
    %908 = vmatpush1.msra.mxu0 0.0
    %909 = vmatprep.subr.mxu0 0.0
    %910 = vmatpush1.msra.mxu0 0.0
    %911 = vmatprep.subr.mxu0 0.0
    %912 = vmatpush1.msra.mxu0 0.0
    %913 = vmatprep.subr.mxu0 0.0
    %914 = vmatpush1.msra.mxu0 0.0
    %915 = vmatprep.subr.mxu0 0.0
    %916 = vmatpush1.msra.mxu0 0.0
    %917 = vmatprep.subr.mxu0 0.0
    %918 = vmatpush1.msra.mxu0 0.0
    %919 = vmatprep.subr.mxu0 0.0
    %920 = vmatpush1.msra.mxu0 0.0
    %921 = vmatprep.subr.mxu0 0.0
    %922 = vmatpush1.msra.mxu0 0.0
    %923 = vmatprep.subr.mxu0 0.0
    %924 = vmatpush1.msra.mxu0 0.0
    %925 = vmatprep.subr.mxu0 0.0
    %926 = vmatpush1.msra.mxu0 0.0
    %927 = vmatprep.subr.mxu0 0.0
    %928 = vmatpush1.msra.mxu0 0.0
    %929 = vmatprep.subr.mxu0 0.0
    %930 = vmatpush1.msra.mxu0 0.0
    %931 = vmatprep.subr.mxu0 0.0
    %932 = vmatpush1.msra.mxu0 0.0
    %933 = vmatprep.subr.mxu0 0.0
    %934 = vmatpush1.msra.mxu0 0.0
    %935 = vmatprep.subr.mxu0 0.0
    %936 = vmatpush1.msra.mxu0 0.0
    %937 = vmatprep.subr.mxu0 0.0
    %938 = vmatpush1.msra.mxu0 0.0
    %939 = vmatprep.subr.mxu0 0.0
    %940 = vmatpush1.msra.mxu0 0.0
    %941 = vmatprep.subr.mxu0 0.0
    %942 = vmatpush1.msra.mxu0 0.0
    %943 = vmatprep.subr.mxu0 0.0
    %944 = vmatpush1.msra.mxu0 0.0
    %945 = vmatprep.subr.mxu0 0.0
    %946 = vmatpush1.msra.mxu0 0.0
    %947 = vmatprep.subr.mxu0 0.0
    %948 = vmatpush1.msra.mxu0 0.0
    %949 = vmatprep.subr.mxu0 0.0
    %950 = vmatpush1.msra.mxu0 0.0
    %951 = vmatprep.subr.mxu0 0.0
    %952 = vmatpush1.msra.mxu0 0.0
    %953 = vmatprep.subr.mxu0 0.0
    %954 = vmatpush1.msra.mxu0 0.0
    %955 = vmatprep.subr.mxu0 0.0
    %956 = vmatpush1.msra.mxu0 0.0
    %957 = vmatprep.subr.mxu0 0.0
    %958 = vmatpush1.msra.mxu0 0.0
    %959 = vmatprep.subr.mxu0 0.0
    %960 = vmatpush1.msra.mxu0 0.0
    %961 = vmatprep.subr.mxu0 0.0
    %962 = vmatpush1.msra.mxu0 0.0
    %963 = vmatprep.mubr.f32.mxu0 0.0
    %964 = vmatmul.mubr.f32.gmra.mrb[0].mxu0 %v897
    %v965 = vpop.f32.mrb[0].mxu0
    %v966 = vadd.f32 0.0, %v965
    %v967 = vpop.f32.mrb[0].mxu0
    %968 = vdwg.mxu0
    %v969 = vadd.f32 %v893, %v966
    %v970 = vtanh.pop %v969
    %v971 = vmul.f32 %v970, 0.5
    %v972 = vadd.f32 %v971, 0.5
    %v973 = vmul.f32 %v972, %v883
    %975 = vrot.lane.b32.xlu0 %v970, 64
    %v976 = vpop.permute.xlu0 %975
    %v978 = vmul.f32 %v972, %v976
    %980 = vrot.lane.b32.xlu0 %v978, 32
    %v981 = vpop.permute.xlu0 %980
    %v983 = vadd.f32 %v973, %v981
    %v984 = vtanh.pop %v983
    %986 = vrot.lane.b32.xlu0 %v984, 64
    %v987 = vpop.permute.xlu0 %986
    %v989 = vmul.f32 %v972, %v987
    %s990 = scalar_lea.vmem [#allocation2], 7
    %v991 = vld [vmem:[%s990] ss:$8 sm:$0xf]
    %v992 = vld [vmem:[%s990] ss:$8 sm:$0xf0]
    %v993 = vor.u32 %v991, %v992
    %995 = vrot.lane.b32.xlu0 %v989, 32
    %v996 = vpop.permute.xlu0 %995
    %v997 = vsel %vm291, %v996, 0
    %999 = vmatprep.subr.mxu0 0.0
    %1000 = vmatpush1.msra.mxu0 %v282
    %1001 = vmatprep.subr.mxu0 0.0
    %1002 = vmatpush1.msra.mxu0 %v283
    %1003 = vmatprep.subr.mxu0 0.0
    %1004 = vmatpush1.msra.mxu0 %v284
    %1005 = vmatprep.subr.mxu0 0.0
    %1006 = vmatpush1.msra.mxu0 %v285
    %1007 = vmatprep.subr.mxu0 0.0
    %1008 = vmatpush1.msra.mxu0 0.0
    %1009 = vmatprep.subr.mxu0 0.0
    %1010 = vmatpush1.msra.mxu0 0.0
    %1011 = vmatprep.subr.mxu0 0.0
    %1012 = vmatpush1.msra.mxu0 0.0
    %1013 = vmatprep.subr.mxu0 0.0
    %1014 = vmatpush1.msra.mxu0 0.0
    %1015 = vmatprep.subr.mxu0 0.0
    %1016 = vmatpush1.msra.mxu0 0.0
    %1017 = vmatprep.subr.mxu0 0.0
    %1018 = vmatpush1.msra.mxu0 0.0
    %1019 = vmatprep.subr.mxu0 0.0
    %1020 = vmatpush1.msra.mxu0 0.0
    %1021 = vmatprep.subr.mxu0 0.0
    %1022 = vmatpush1.msra.mxu0 0.0
    %1023 = vmatprep.subr.mxu0 0.0
    %1024 = vmatpush1.msra.mxu0 0.0
    %1025 = vmatprep.subr.mxu0 0.0
    %1026 = vmatpush1.msra.mxu0 0.0
    %1027 = vmatprep.subr.mxu0 0.0
    %1028 = vmatpush1.msra.mxu0 0.0
    %1029 = vmatprep.subr.mxu0 0.0
    %1030 = vmatpush1.msra.mxu0 0.0
    %1031 = vmatprep.subr.mxu0 0.0
    %1032 = vmatpush1.msra.mxu0 0.0
    %1033 = vmatprep.subr.mxu0 0.0
    %1034 = vmatpush1.msra.mxu0 0.0
    %1035 = vmatprep.subr.mxu0 0.0
    %1036 = vmatpush1.msra.mxu0 0.0
    %1037 = vmatprep.subr.mxu0 0.0
    %1038 = vmatpush1.msra.mxu0 0.0
    %1039 = vmatprep.subr.mxu0 0.0
    %1040 = vmatpush1.msra.mxu0 0.0
    %1041 = vmatprep.subr.mxu0 0.0
    %1042 = vmatpush1.msra.mxu0 0.0
    %1043 = vmatprep.subr.mxu0 0.0
    %1044 = vmatpush1.msra.mxu0 0.0
    %1045 = vmatprep.subr.mxu0 0.0
    %1046 = vmatpush1.msra.mxu0 0.0
    %1047 = vmatprep.subr.mxu0 0.0
    %1048 = vmatpush1.msra.mxu0 0.0
    %1049 = vmatprep.subr.mxu0 0.0
    %1050 = vmatpush1.msra.mxu0 0.0
    %1051 = vmatprep.subr.mxu0 0.0
    %1052 = vmatpush1.msra.mxu0 0.0
    %1053 = vmatprep.subr.mxu0 0.0
    %1054 = vmatpush1.msra.mxu0 0.0
    %1055 = vmatprep.subr.mxu0 0.0
    %1056 = vmatpush1.msra.mxu0 0.0
    %1057 = vmatprep.subr.mxu0 0.0
    %1058 = vmatpush1.msra.mxu0 0.0
    %1059 = vmatprep.subr.mxu0 0.0
    %1060 = vmatpush1.msra.mxu0 0.0
    %1061 = vmatprep.subr.mxu0 0.0
    %1062 = vmatpush1.msra.mxu0 0.0
    %1063 = vmatprep.mubr.f32.mxu0 0.0
    %1064 = vmatmul.mubr.f32.gmra.mrb[0].mxu0 %v997
    %v1065 = vpop.f32.mrb[0].mxu0
    %v1066 = vadd.f32 0.0, %v1065
    %v1067 = vpop.f32.mrb[0].mxu0
    %1068 = vdwg.mxu0
    %v1069 = vadd.f32 %v993, %v1066
    %v1070 = vtanh.pop %v1069
    %v1071 = vmul.f32 %v1070, 0.5
    %v1072 = vadd.f32 %v1071, 0.5
    %v1073 = vmul.f32 %v1072, %v983
    %1075 = vrot.lane.b32.xlu0 %v1070, 64
    %v1076 = vpop.permute.xlu0 %1075
    %v1078 = vmul.f32 %v1072, %v1076
    %1080 = vrot.lane.b32.xlu0 %v1078, 32
    %v1081 = vpop.permute.xlu0 %1080
    %v1083 = vadd.f32 %v1073, %v1081
    %v1084 = vtanh.pop %v1083
    %1086 = vrot.lane.b32.xlu0 %v1084, 64
    %v1087 = vpop.permute.xlu0 %1086
    %v1089 = vmul.f32 %v1072, %v1087
    %1091 = vrot.lane.b32.xlu0 %v1089, 32
    %v1092 = vpop.permute.xlu0 %1091
    %v1094 = vsel %vm291, %v1092, 0.0
    %1095 = vst [vmem:[%s11] sm:$0xff] %v1094
    %1097 = vrot.lane.b32.xlu0 %v1083, 96
    %v1098 = vpop.permute.xlu0 %1097
    %v1100 = vsel %vm291, %v1098, 0.0
    %1101 = vst [vmem:[%s12] sm:$0xff] %v1100
    %v1102 = vld [vmem:[#allocation11] sm:$0xff]
    %v1103 = vld [vmem:[#allocation11 + $0x8] sm:$0xff]
    %v1104 = vld [vmem:[#allocation11 + $0x10] sm:$0xff]
    %v1105 = vld [vmem:[#allocation11 + $0x18] sm:$0xff]
    %v1106 = vld [vmem:[#allocation13] sm:$0x1]
    %v1108 = vlaneseq
    %v1109 = vshrl.u32 %v1108, 7
    %v1110 = vsub.s32 0, %v1109
    %v1111 = vrot.slane %v1106, %v1110
    %v1113 = vsel %vm291, %v1092, 0
    %1115 = vmatprep.subr.mxu0 0.0
    %1116 = vmatpush1.msra.mxu0 %v1102
    %1117 = vmatprep.subr.mxu0 0.0
    %1118 = vmatpush1.msra.mxu0 %v1103
    %1119 = vmatprep.subr.mxu0 0.0
    %1120 = vmatpush1.msra.mxu0 %v1104
    %1121 = vmatprep.subr.mxu0 0.0
    %1122 = vmatpush1.msra.mxu0 %v1105
    %1123 = vmatprep.subr.mxu0 0.0
    %1124 = vmatpush1.msra.mxu0 0.0
    %1125 = vmatprep.subr.mxu0 0.0
    %1126 = vmatpush1.msra.mxu0 0.0
    %1127 = vmatprep.subr.mxu0 0.0
    %1128 = vmatpush1.msra.mxu0 0.0
    %1129 = vmatprep.subr.mxu0 0.0
    %1130 = vmatpush1.msra.mxu0 0.0
    %1131 = vmatprep.subr.mxu0 0.0
    %1132 = vmatpush1.msra.mxu0 0.0
    %1133 = vmatprep.subr.mxu0 0.0
    %1134 = vmatpush1.msra.mxu0 0.0
    %1135 = vmatprep.subr.mxu0 0.0
    %1136 = vmatpush1.msra.mxu0 0.0
    %1137 = vmatprep.subr.mxu0 0.0
    %1138 = vmatpush1.msra.mxu0 0.0
    %1139 = vmatprep.subr.mxu0 0.0
    %1140 = vmatpush1.msra.mxu0 0.0
    %1141 = vmatprep.subr.mxu0 0.0
    %1142 = vmatpush1.msra.mxu0 0.0
    %1143 = vmatprep.subr.mxu0 0.0
    %1144 = vmatpush1.msra.mxu0 0.0
    %1145 = vmatprep.subr.mxu0 0.0
    %1146 = vmatpush1.msra.mxu0 0.0
    %1147 = vmatprep.subr.mxu0 0.0
    %1148 = vmatpush1.msra.mxu0 0.0
    %1149 = vmatprep.subr.mxu0 0.0
    %1150 = vmatpush1.msra.mxu0 0.0
    %1151 = vmatprep.subr.mxu0 0.0
    %1152 = vmatpush1.msra.mxu0 0.0
    %1153 = vmatprep.subr.mxu0 0.0
    %1154 = vmatpush1.msra.mxu0 0.0
    %1155 = vmatprep.subr.mxu0 0.0
    %1156 = vmatpush1.msra.mxu0 0.0
    %1157 = vmatprep.subr.mxu0 0.0
    %1158 = vmatpush1.msra.mxu0 0.0
    %1159 = vmatprep.subr.mxu0 0.0
    %1160 = vmatpush1.msra.mxu0 0.0
    %1161 = vmatprep.subr.mxu0 0.0
    %1162 = vmatpush1.msra.mxu0 0.0
    %1163 = vmatprep.subr.mxu0 0.0
    %1164 = vmatpush1.msra.mxu0 0.0
    %1165 = vmatprep.subr.mxu0 0.0
    %1166 = vmatpush1.msra.mxu0 0.0
    %1167 = vmatprep.subr.mxu0 0.0
    %1168 = vmatpush1.msra.mxu0 0.0
    %1169 = vmatprep.subr.mxu0 0.0
    %1170 = vmatpush1.msra.mxu0 0.0
    %1171 = vmatprep.subr.mxu0 0.0
    %1172 = vmatpush1.msra.mxu0 0.0
    %1173 = vmatprep.subr.mxu0 0.0
    %1174 = vmatpush1.msra.mxu0 0.0
    %1175 = vmatprep.subr.mxu0 0.0
    %1176 = vmatpush1.msra.mxu0 0.0
    %1177 = vmatprep.subr.mxu0 0.0
    %1178 = vmatpush1.msra.mxu0 0.0
    %1179 = vmatprep.mubr.f32.mxu0 0.0
    %1180 = vmatmul.mubr.f32.gmra.mrb[0].mxu0 %v1113
    %v1181 = vpop.f32.mrb[0].mxu0
    %v1182 = vadd.f32 %v1111, %v1181
    %v1183 = vpop.f32.mrb[0].mxu0
    %1184 = vdwg.mxu0
    %v1185 = vmax.f32 %v1182, 0.0
    %v1186 = vld [vmem:[%s8] sm:$0xff]
    %v1187 = vld [vmem:[%s8 + $0x8] sm:$0xff]
    %v1188 = vld [vmem:[%s8 + $0x10] sm:$0xff]
    %v1189 = vld [vmem:[%s8 + $0x18] sm:$0xff]
    %v1190 = vld [vmem:[%s9] sm:$0x1]
    %v1192 = vlaneseq
    %v1193 = vshrl.u32 %v1192, 7
    %v1194 = vsub.s32 0, %v1193
    %v1195 = vrot.slane %v1190, %v1194
    %v1198 = vsel %vm291, %v1185, 0
    %1200 = vmatprep.subr.mxu0 0.0
    %1201 = vmatpush1.msra.mxu0 %v1186
    %1202 = vmatprep.subr.mxu0 0.0
    %1203 = vmatpush1.msra.mxu0 %v1187
    %1204 = vmatprep.subr.mxu0 0.0
    %1205 = vmatpush1.msra.mxu0 %v1188
    %1206 = vmatprep.subr.mxu0 0.0
    %1207 = vmatpush1.msra.mxu0 %v1189
    %1208 = vmatprep.subr.mxu0 0.0
    %1209 = vmatpush1.msra.mxu0 0.0
    %1210 = vmatprep.subr.mxu0 0.0
    %1211 = vmatpush1.msra.mxu0 0.0
    %1212 = vmatprep.subr.mxu0 0.0
    %1213 = vmatpush1.msra.mxu0 0.0
    %1214 = vmatprep.subr.mxu0 0.0
    %1215 = vmatpush1.msra.mxu0 0.0
    %1216 = vmatprep.subr.mxu0 0.0
    %1217 = vmatpush1.msra.mxu0 0.0
    %1218 = vmatprep.subr.mxu0 0.0
    %1219 = vmatpush1.msra.mxu0 0.0
    %1220 = vmatprep.subr.mxu0 0.0
    %1221 = vmatpush1.msra.mxu0 0.0
    %1222 = vmatprep.subr.mxu0 0.0
    %1223 = vmatpush1.msra.mxu0 0.0
    %1224 = vmatprep.subr.mxu0 0.0
    %1225 = vmatpush1.msra.mxu0 0.0
    %1226 = vmatprep.subr.mxu0 0.0
    %1227 = vmatpush1.msra.mxu0 0.0
    %1228 = vmatprep.subr.mxu0 0.0
    %1229 = vmatpush1.msra.mxu0 0.0
    %1230 = vmatprep.subr.mxu0 0.0
    %1231 = vmatpush1.msra.mxu0 0.0
    %1232 = vmatprep.subr.mxu0 0.0
    %1233 = vmatpush1.msra.mxu0 0.0
    %1234 = vmatprep.subr.mxu0 0.0
    %1235 = vmatpush1.msra.mxu0 0.0
    %1236 = vmatprep.subr.mxu0 0.0
    %1237 = vmatpush1.msra.mxu0 0.0
    %1238 = vmatprep.subr.mxu0 0.0
    %1239 = vmatpush1.msra.mxu0 0.0
    %1240 = vmatprep.subr.mxu0 0.0
    %1241 = vmatpush1.msra.mxu0 0.0
    %1242 = vmatprep.subr.mxu0 0.0
    %1243 = vmatpush1.msra.mxu0 0.0
    %1244 = vmatprep.subr.mxu0 0.0
    %1245 = vmatpush1.msra.mxu0 0.0
    %1246 = vmatprep.subr.mxu0 0.0
    %1247 = vmatpush1.msra.mxu0 0.0
    %1248 = vmatprep.subr.mxu0 0.0
    %1249 = vmatpush1.msra.mxu0 0.0
    %1250 = vmatprep.subr.mxu0 0.0
    %1251 = vmatpush1.msra.mxu0 0.0
    %1252 = vmatprep.subr.mxu0 0.0
    %1253 = vmatpush1.msra.mxu0 0.0
    %1254 = vmatprep.subr.mxu0 0.0
    %1255 = vmatpush1.msra.mxu0 0.0
    %1256 = vmatprep.subr.mxu0 0.0
    %1257 = vmatpush1.msra.mxu0 0.0
    %1258 = vmatprep.subr.mxu0 0.0
    %1259 = vmatpush1.msra.mxu0 0.0
    %1260 = vmatprep.subr.mxu0 0.0
    %1261 = vmatpush1.msra.mxu0 0.0
    %1262 = vmatprep.subr.mxu0 0.0
    %1263 = vmatpush1.msra.mxu0 0.0
    %1264 = vmatprep.mubr.f32.mxu0 0.0
    %1265 = vmatmul.mubr.f32.gmra.mrb[0].mxu0 %v1198
    %v1266 = vpop.f32.mrb[0].mxu0
    %v1267 = vadd.f32 %v1195, %v1266
    %v1268 = vpop.f32.mrb[0].mxu0
    %1269 = vdwg.mxu0
    %v1270 = vtanh.pop %v1267
    %1271 = vst [vmem:[%s10] sm:$0xff] %v1270
    // Predicated region
    $region70: #{_lambda_.1} parent=1 // pred_check
      _
    $region71: #{_lambda_.1} parent=1 // pred_check_branch
      %1273 = sbr.rel (0) target = $region73
    $region72: #{_lambda_.1} parent=1 // pred_region
      _
    $region73: #{_lambda_.1} parent=1 // pred_fallthru
      _
    // Predicated region
    $region74: #{_lambda_.1} parent=1 // pred_check
      _
    $region75: #{_lambda_.1} parent=1 // pred_check_branch
      %1275 = sbr.rel (0) target = $region77
    $region76: #{_lambda_.1} parent=1 // pred_region
      _
    $region77: #{_lambda_.1} parent=1 // pred_fallthru
      _
    // Predicated region
    $region78: #{_lambda_.1} parent=1 // pred_check
      _
    $region79: #{_lambda_.1} parent=1 // pred_check_branch
      %1277 = sbr.rel (0) target = $region81
    $region80: #{_lambda_.1} parent=1 // pred_region
      _
    $region81: #{_lambda_.1} parent=1 // pred_fallthru
      _
    // Predicated region
    $region82: #{_lambda_.1} parent=1 // pred_check
      _
    $region83: #{_lambda_.1} parent=1 // pred_check_branch
      %1279 = sbr.rel (0) target = $region85
    $region84: #{_lambda_.1} parent=1 // pred_region
      _
    $region85: #{_lambda_.1} parent=1 // pred_fallthru
      _
    // Predicated region
    $region86: #{_lambda_.1} parent=1 // pred_check
      _
    $region87: #{_lambda_.1} parent=1 // pred_check_branch
      %1281 = sbr.rel (0) target = $region89
    $region88: #{_lambda_.1} parent=1 // pred_region
      _
    $region89: #{_lambda_.1} parent=1 // pred_fallthru
      _
    // Predicated region
    $region90: #{_lambda_.1} parent=1 // pred_check
      _
    $region91: #{_lambda_.1} parent=1 // pred_check_branch
      %1283 = sbr.rel (0) target = $region93
    $region92: #{_lambda_.1} parent=1 // pred_region
      _
    $region93: #{_lambda_.1} parent=1 // pred_fallthru
      _
    %1284 = vsyncpa [#allocation4], 1
    %1285 = vsyncpa [#allocation6], 1
    %1286 = vsyncpa [#allocation9], 1
    %1287 = vsyncpa [#allocation12], 1

</llo_original>
